<compile_context>
chip_gen: v5e
topology: v5e:2x2
jax: 0.10.0
libtpu: 0.0.40
codegen_flags: <defaults>
</compile_context>

<pallas_src>
import functools

import jax
import jax.numpy as jnp
from jax.experimental import pallas as pl
from jax.experimental.pallas import tpu as pltpu


def _round_up(v, m):
    return ((v + m - 1) // m) * m


# ----------------------------------------------------------------------------
# Pallas kernel: fused pad + im2col + single K=KH*KW*C MXU dot + bias
# ----------------------------------------------------------------------------
def _conv_fused_kernel(x_ref, w_ref, b_ref, o_ref, xf_ref, *,
                       H, W, Wp, KH, KW, TMp):
    # x_ref : (N, C, H, W)        f32   raw NCHW input (whole batch)
    # w_ref : (Cout, KH*KW*C)     bf16  folded weight matrix
    # b_ref : (Cout, 1)           f32   bias column (broadcast over lanes)
    # o_ref : (N, Cout, TMp)      f32   lane-dense output, TMp % 128 == 0
    # xf_ref: (N, C, L_pad)       f32   VMEM scratch: zero-padded image,
    #                                   spatial dims flattened keeping Wp
    N, C, _, _ = x_ref.shape
    ph, pw = KH // 2, KW // 2

    # (1) Fused zero-pad + flatten into VMEM scratch (no HBM intermediate).
    xf_ref[...] = jnp.zeros_like(xf_ref)
    x_all = x_ref[...]                                  # (N, C, H, W), ~4 KB
    for n in range(N):
        for h in range(H):
            off = (h + ph) * Wp + pw
            xf_ref[n, :, off:off + W] = x_all[n, :, h, :]

    # (2) im2col fold: stack the KH*KW lane-shifted slices along K and the N
    #     images along lanes.  Tap (kh, kw) is a static lane-shifted slice of
    #     the same scratch buffer (offset d = kh*Wp + kw).
    img_blocks = []
    for n in range(N):
        taps = [
            xf_ref[n, :, kh * Wp + kw: kh * Wp + kw + TMp]      # (C, TMp) f32
            for kh in range(KH) for kw in range(KW)
        ]
        # K order = (kh*KW + kw)*C + c, matching the weight fold below.
        img_blocks.append(jnp.concatenate(taps, axis=0).astype(jnp.bfloat16))
    xs = jnp.concatenate(img_blocks, axis=1)            # (K, N*TMp) bf16

    # (3) ONE MXU dot with K = KH*KW*C, f32 accumulation; f32 bias epilogue
    #     (kept off bf16 elementwise for v5e compatibility).
    y = jnp.dot(w_ref[...], xs, preferred_element_type=jnp.float32) + b_ref[...]

    # (4) Lane-dense unmasked stores: TMp and the per-image lane offsets are
    #     multiples of 128.
    for n in range(N):
        o_ref[n] = y[:, n * TMp:(n + 1) * TMp]


def _pallas_conv2d_same(x, w2, b2, *, Wp, KH, KW, TMp, L_pad):
    """x: (N, C, H, W) f32, w2: (Cout, KH*KW*C) bf16, b2: (Cout, 1) f32
    -> (N, Cout, TMp) f32 with TMp = round_up(H*Wp, 128)."""
    N, C, H, W = x.shape
    Cout, K = w2.shape

    kernel = functools.partial(_conv_fused_kernel,
                               H=H, W=W, Wp=Wp, KH=KH, KW=KW, TMp=TMp)

    return pl.pallas_call(
        kernel,
        out_shape=jax.ShapeDtypeStruct((N, Cout, TMp), jnp.float32),
        grid_spec=pltpu.PrefetchScalarGridSpec(
            num_scalar_prefetch=0,
            grid=(1,),                       # whole batch in one grid step
            in_specs=[
                pl.BlockSpec((N, C, H, W), lambda i: (0, 0, 0, 0)),
                pl.BlockSpec((Cout, K), lambda i: (0, 0)),
                pl.BlockSpec((Cout, 1), lambda i: (0, 0)),
            ],
            out_specs=pl.BlockSpec((N, Cout, TMp), lambda i: (0, 0, 0)),
            scratch_shapes=[pltpu.VMEM((N, C, L_pad), jnp.float32)],
        ),
        compiler_params=pltpu.CompilerParams(
            dimension_semantics=("arbitrary",),
            # Actual footprint < 100 KB; 32 MiB is at the scoped default and
            # well inside 64 MiB (v7x) / 128 MiB (v5e/v6e) physical VMEM.
            vmem_limit_bytes=32 * 1024 * 1024,
        ),
    )(x, w2, b2)


# ----------------------------------------------------------------------------
# Inner module: Conv2d(Cin, Cout, 3, padding=1, bias=True) with Pallas hot path
# ----------------------------------------------------------------------------
class PallasConv2d:
    def __init__(self, weight, bias):
        # weight: (Cout, Cin, KH, KW), bias: (Cout,)  -- PyTorch conventions
        self.weight = weight
        self.bias = bias

    def __call__(self, x):
        # x: (N, Cin, H, W) NCHW, stride=1, "same" padding -> (N, Cout, H, W)
        N, C, H, W = x.shape
        Cout, Cin, KH, KW = self.weight.shape
        assert C == Cin and KH % 2 == 1 and KW % 2 == 1
        ph, pw = KH // 2, KW // 2
        Wp = W + 2 * pw                        # padded width, kept in flat layout
        TM = H * Wp                            # valid flat output length
        TMp = _round_up(TM, 128)               # lane-dense (unmasked stores)
        max_d = (KH - 1) * Wp + (KW - 1)       # largest tap offset
        L_pad = max_d + TMp                    # scratch length (covers over-read)

        # Parameter fold: weight (Cout, Cin, KH, KW) -> (Cout, KH*KW*Cin) with
        # K index = (kh*KW + kw)*Cin + c, matching the kernel's im2col order.
        w2 = (self.weight.transpose(0, 2, 3, 1)
              .reshape(Cout, KH * KW * Cin)
              .astype(jnp.bfloat16))
        b2 = self.bias.reshape(Cout, 1).astype(jnp.float32)

        # Hot path: pad + im2col + conv + bias all inside one Pallas call.
        out_flat = _pallas_conv2d_same(x, w2, b2, Wp=Wp, KH=KH, KW=KW,
                                       TMp=TMp, L_pad=L_pad)

        # Drop the lane-padding junk, deinterleave rows, drop padded-width
        # columns.  No transpose (output is already (N, Cout, ...)).
        out = out_flat[:, :, :TM].reshape(N, Cout, H, Wp)[:, :, :, :W]
        return out


# ----------------------------------------------------------------------------
# EisenModuleWrapper: same forward semantics as the PyTorch class
# ----------------------------------------------------------------------------
class EisenModuleWrapper:
    def __init__(self, module, input_names, output_names):
        self.input_names = input_names
        self.output_names = output_names
        self.module = module

    def __call__(self, *args, **kwargs):
        return self.forward(*args, **kwargs)

    def forward(self, *args, **kwargs):
        input_list = list(args)
        n_args = len(input_list)
        for key in kwargs.keys():
            if key in self.input_names[n_args:]:
                input_list.append(kwargs[key])
        outputs = self.module(*input_list)
        if not isinstance(outputs, (list, tuple)):
            outputs = (outputs,)
        ret_dict = {}
        for output, output_name in zip(outputs, self.output_names):
            ret_dict[output_name] = output
        return ret_dict


if __name__ == "__main__":
    key = jax.random.PRNGKey(0)
    k_x, k_w, k_b = jax.random.split(key, 3)

    N, Cin, H, W = 2, 4, 16, 16
    Cout, KH, KW = 8, 3, 3

    x = jax.random.normal(k_x, (N, Cin, H, W), dtype=jnp.float32)
    # Deterministic parameter init (synthetic; no checkpoint load).
    weight = jax.random.normal(k_w, (Cout, Cin, KH, KW), dtype=jnp.float32) * 0.1
    bias = jax.random.normal(k_b, (Cout,), dtype=jnp.float32) * 0.1

    inner = PallasConv2d(weight, bias)
    adapted_module = EisenModuleWrapper(inner, ["image"], ["prediction"])

    out_dict = adapted_module(image=x)
    pred = jax.block_until_ready(out_dict["prediction"])

    assert pred.shape == (N, Cout, H, W)
    assert bool(jnp.all(jnp.isfinite(pred)))

    # Pure-JAX reference using the same bf16-rounded operands (f32 accumulation).
    xb = x.astype(jnp.bfloat16).astype(jnp.float32)
    wb = weight.astype(jnp.bfloat16).astype(jnp.float32)
    xp = jnp.pad(xb, ((0, 0), (0, 0), (1, 1), (1, 1)))
    ref = jnp.zeros((N, Cout, H, W), dtype=jnp.float32)
    for kh in range(KH):
        for kw in range(KW):
            ref = ref + jnp.einsum(
                "oc,nchw->nohw", wb[:, :, kh, kw], xp[:, :, kh:kh + H, kw:kw + W]
            )
    ref = ref + bias[None, :, None, None]
    assert bool(jnp.allclose(pred, ref, rtol=1e-3, atol=1e-3))

    print("KERNEL_OK")
</pallas_src>

<mosaic_0001>
module attributes {stable_mosaic.version = 11 : i64} {
  func.func @_conv_fused_kernel(%arg0: i32, %arg1: memref<2x4x16x16xf32, #tpu.memory_space<vmem>>, %arg2: memref<8x36xbf16, #tpu.memory_space<vmem>>, %arg3: memref<8x1xf32, #tpu.memory_space<vmem>>, %arg4: memref<2x8x384xf32, #tpu.memory_space<vmem>>, %arg5: memref<2x4x422xf32, #tpu.memory_space<vmem>>) attributes {dimension_semantics = [#tpu.dimension_semantics<arbitrary>], iteration_bounds = array<i64: 1>, scalar_prefetch = 0 : i64, scratch_operands = 1 : i64, tpu.core_type = #tpu.core_type<tc>, window_params = [{pipeline_mode = #tpu.pipeline_mode<synchronous>, transform_indices = @transform_0, window_bounds = array<i64: 2, 4, 16, 16>}, {pipeline_mode = #tpu.pipeline_mode<synchronous>, transform_indices = @transform_1, window_bounds = array<i64: 8, 36>}, {pipeline_mode = #tpu.pipeline_mode<synchronous>, transform_indices = @transform_2, window_bounds = array<i64: 8, 1>}, {pipeline_mode = #tpu.pipeline_mode<synchronous>, transform_indices = @transform_3, window_bounds = array<i64: 2, 8, 384>}]} {
    %cst = arith.constant 0.000000e+00 : f32
    %0 = vector.broadcast %cst : f32 to vector<2x4x422xf32>
    %c0 = arith.constant 0 : index
    %c0_0 = arith.constant 0 : index
    %c0_1 = arith.constant 0 : index
    %1 = vector.load %arg5[%c0, %c0_0, %c0_1] : memref<2x4x422xf32, #tpu.memory_space<vmem>>, vector<2x4x422xf32>
    tpu.vector_store %arg5[%c0, %c0_0, %c0_1], %0 {strides = array<i32>} : memref<2x4x422xf32, #tpu.memory_space<vmem>>, vector<2x4x422xf32>,
    %c0_2 = arith.constant 0 : index
    %c0_3 = arith.constant 0 : index
    %c0_4 = arith.constant 0 : index
    %c0_5 = arith.constant 0 : index
    %2 = vector.load %arg1[%c0_2, %c0_3, %c0_4, %c0_5] : memref<2x4x16x16xf32, #tpu.memory_space<vmem>>, vector<2x4x16x16xf32>
    %3 = vector.extract_strided_slice %2 {offsets = [0, 0, 0, 0], sizes = [1, 4, 1, 16], strides = [1, 1, 1, 1]} : vector<2x4x16x16xf32> to vector<1x4x1x16xf32>
    %4 = vector.shape_cast %3 : vector<1x4x1x16xf32> to vector<4x16xf32>
    %c0_6 = arith.constant 0 : index
    %c0_7 = arith.constant 0 : index
    %c19 = arith.constant 19 : index
    %5 = vector.load %arg5[%c0_6, %c0_7, %c19] : memref<2x4x422xf32, #tpu.memory_space<vmem>>, vector<1x4x16xf32>
    %6 = vector.shape_cast %5 : vector<1x4x16xf32> to vector<4x16xf32>
    %7 = vector.shape_cast %4 : vector<4x16xf32> to vector<1x4x16xf32>
    tpu.vector_store %arg5[%c0_6, %c0_7, %c19], %7 {strides = array<i32>} : memref<2x4x422xf32, #tpu.memory_space<vmem>>, vector<1x4x16xf32>,
    %8 = vector.extract_strided_slice %2 {offsets = [0, 0, 1, 0], sizes = [1, 4, 1, 16], strides = [1, 1, 1, 1]} : vector<2x4x16x16xf32> to vector<1x4x1x16xf32>
    %9 = vector.shape_cast %8 : vector<1x4x1x16xf32> to vector<4x16xf32>
    %c0_8 = arith.constant 0 : index
    %c0_9 = arith.constant 0 : index
    %c37 = arith.constant 37 : index
    %10 = vector.load %arg5[%c0_8, %c0_9, %c37] : memref<2x4x422xf32, #tpu.memory_space<vmem>>, vector<1x4x16xf32>
    %11 = vector.shape_cast %10 : vector<1x4x16xf32> to vector<4x16xf32>
    %12 = vector.shape_cast %9 : vector<4x16xf32> to vector<1x4x16xf32>
    tpu.vector_store %arg5[%c0_8, %c0_9, %c37], %12 {strides = array<i32>} : memref<2x4x422xf32, #tpu.memory_space<vmem>>, vector<1x4x16xf32>,
    %13 = vector.extract_strided_slice %2 {offsets = [0, 0, 2, 0], sizes = [1, 4, 1, 16], strides = [1, 1, 1, 1]} : vector<2x4x16x16xf32> to vector<1x4x1x16xf32>
    %14 = vector.shape_cast %13 : vector<1x4x1x16xf32> to vector<4x16xf32>
    %c0_10 = arith.constant 0 : index
    %c0_11 = arith.constant 0 : index
    %c55 = arith.constant 55 : index
    %15 = vector.load %arg5[%c0_10, %c0_11, %c55] : memref<2x4x422xf32, #tpu.memory_space<vmem>>, vector<1x4x16xf32>
    %16 = vector.shape_cast %15 : vector<1x4x16xf32> to vector<4x16xf32>
    %17 = vector.shape_cast %14 : vector<4x16xf32> to vector<1x4x16xf32>
    tpu.vector_store %arg5[%c0_10, %c0_11, %c55], %17 {strides = array<i32>} : memref<2x4x422xf32, #tpu.memory_space<vmem>>, vector<1x4x16xf32>,
    %18 = vector.extract_strided_slice %2 {offsets = [0, 0, 3, 0], sizes = [1, 4, 1, 16], strides = [1, 1, 1, 1]} : vector<2x4x16x16xf32> to vector<1x4x1x16xf32>
    %19 = vector.shape_cast %18 : vector<1x4x1x16xf32> to vector<4x16xf32>
    %c0_12 = arith.constant 0 : index
    %c0_13 = arith.constant 0 : index
    %c73 = arith.constant 73 : index
    %20 = vector.load %arg5[%c0_12, %c0_13, %c73] : memref<2x4x422xf32, #tpu.memory_space<vmem>>, vector<1x4x16xf32>
    %21 = vector.shape_cast %20 : vector<1x4x16xf32> to vector<4x16xf32>
    %22 = vector.shape_cast %19 : vector<4x16xf32> to vector<1x4x16xf32>
    tpu.vector_store %arg5[%c0_12, %c0_13, %c73], %22 {strides = array<i32>} : memref<2x4x422xf32, #tpu.memory_space<vmem>>, vector<1x4x16xf32>,
    %23 = vector.extract_strided_slice %2 {offsets = [0, 0, 4, 0], sizes = [1, 4, 1, 16], strides = [1, 1, 1, 1]} : vector<2x4x16x16xf32> to vector<1x4x1x16xf32>
    %24 = vector.shape_cast %23 : vector<1x4x1x16xf32> to vector<4x16xf32>
    %c0_14 = arith.constant 0 : index
    %c0_15 = arith.constant 0 : index
    %c91 = arith.constant 91 : index
    %25 = vector.load %arg5[%c0_14, %c0_15, %c91] : memref<2x4x422xf32, #tpu.memory_space<vmem>>, vector<1x4x16xf32>
    %26 = vector.shape_cast %25 : vector<1x4x16xf32> to vector<4x16xf32>
    %27 = vector.shape_cast %24 : vector<4x16xf32> to vector<1x4x16xf32>
    tpu.vector_store %arg5[%c0_14, %c0_15, %c91], %27 {strides = array<i32>} : memref<2x4x422xf32, #tpu.memory_space<vmem>>, vector<1x4x16xf32>,
    %28 = vector.extract_strided_slice %2 {offsets = [0, 0, 5, 0], sizes = [1, 4, 1, 16], strides = [1, 1, 1, 1]} : vector<2x4x16x16xf32> to vector<1x4x1x16xf32>
    %29 = vector.shape_cast %28 : vector<1x4x1x16xf32> to vector<4x16xf32>
    %c0_16 = arith.constant 0 : index
    %c0_17 = arith.constant 0 : index
    %c109 = arith.constant 109 : index
    %30 = vector.load %arg5[%c0_16, %c0_17, %c109] : memref<2x4x422xf32, #tpu.memory_space<vmem>>, vector<1x4x16xf32>
    %31 = vector.shape_cast %30 : vector<1x4x16xf32> to vector<4x16xf32>
    %32 = vector.shape_cast %29 : vector<4x16xf32> to vector<1x4x16xf32>
    tpu.vector_store %arg5[%c0_16, %c0_17, %c109], %32 {strides = array<i32>} : memref<2x4x422xf32, #tpu.memory_space<vmem>>, vector<1x4x16xf32>,
    %33 = vector.extract_strided_slice %2 {offsets = [0, 0, 6, 0], sizes = [1, 4, 1, 16], strides = [1, 1, 1, 1]} : vector<2x4x16x16xf32> to vector<1x4x1x16xf32>
    %34 = vector.shape_cast %33 : vector<1x4x1x16xf32> to vector<4x16xf32>
    %c0_18 = arith.constant 0 : index
    %c0_19 = arith.constant 0 : index
    %c127 = arith.constant 127 : index
    %35 = vector.load %arg5[%c0_18, %c0_19, %c127] : memref<2x4x422xf32, #tpu.memory_space<vmem>>, vector<1x4x16xf32>
    %36 = vector.shape_cast %35 : vector<1x4x16xf32> to vector<4x16xf32>
    %37 = vector.shape_cast %34 : vector<4x16xf32> to vector<1x4x16xf32>
    tpu.vector_store %arg5[%c0_18, %c0_19, %c127], %37 {strides = array<i32>} : memref<2x4x422xf32, #tpu.memory_space<vmem>>, vector<1x4x16xf32>,
    %38 = vector.extract_strided_slice %2 {offsets = [0, 0, 7, 0], sizes = [1, 4, 1, 16], strides = [1, 1, 1, 1]} : vector<2x4x16x16xf32> to vector<1x4x1x16xf32>
    %39 = vector.shape_cast %38 : vector<1x4x1x16xf32> to vector<4x16xf32>
    %c0_20 = arith.constant 0 : index
    %c0_21 = arith.constant 0 : index
    %c145 = arith.constant 145 : index
    %40 = vector.load %arg5[%c0_20, %c0_21, %c145] : memref<2x4x422xf32, #tpu.memory_space<vmem>>, vector<1x4x16xf32>
    %41 = vector.shape_cast %40 : vector<1x4x16xf32> to vector<4x16xf32>
    %42 = vector.shape_cast %39 : vector<4x16xf32> to vector<1x4x16xf32>
    tpu.vector_store %arg5[%c0_20, %c0_21, %c145], %42 {strides = array<i32>} : memref<2x4x422xf32, #tpu.memory_space<vmem>>, vector<1x4x16xf32>,
    %43 = vector.extract_strided_slice %2 {offsets = [0, 0, 8, 0], sizes = [1, 4, 1, 16], strides = [1, 1, 1, 1]} : vector<2x4x16x16xf32> to vector<1x4x1x16xf32>
    %44 = vector.shape_cast %43 : vector<1x4x1x16xf32> to vector<4x16xf32>
    %c0_22 = arith.constant 0 : index
    %c0_23 = arith.constant 0 : index
    %c163 = arith.constant 163 : index
    %45 = vector.load %arg5[%c0_22, %c0_23, %c163] : memref<2x4x422xf32, #tpu.memory_space<vmem>>, vector<1x4x16xf32>
    %46 = vector.shape_cast %45 : vector<1x4x16xf32> to vector<4x16xf32>
    %47 = vector.shape_cast %44 : vector<4x16xf32> to vector<1x4x16xf32>
    tpu.vector_store %arg5[%c0_22, %c0_23, %c163], %47 {strides = array<i32>} : memref<2x4x422xf32, #tpu.memory_space<vmem>>, vector<1x4x16xf32>,
    %48 = vector.extract_strided_slice %2 {offsets = [0, 0, 9, 0], sizes = [1, 4, 1, 16], strides = [1, 1, 1, 1]} : vector<2x4x16x16xf32> to vector<1x4x1x16xf32>
    %49 = vector.shape_cast %48 : vector<1x4x1x16xf32> to vector<4x16xf32>
    %c0_24 = arith.constant 0 : index
    %c0_25 = arith.constant 0 : index
    %c181 = arith.constant 181 : index
    %50 = vector.load %arg5[%c0_24, %c0_25, %c181] : memref<2x4x422xf32, #tpu.memory_space<vmem>>, vector<1x4x16xf32>
    %51 = vector.shape_cast %50 : vector<1x4x16xf32> to vector<4x16xf32>
    %52 = vector.shape_cast %49 : vector<4x16xf32> to vector<1x4x16xf32>
    tpu.vector_store %arg5[%c0_24, %c0_25, %c181], %52 {strides = array<i32>} : memref<2x4x422xf32, #tpu.memory_space<vmem>>, vector<1x4x16xf32>,
    %53 = vector.extract_strided_slice %2 {offsets = [0, 0, 10, 0], sizes = [1, 4, 1, 16], strides = [1, 1, 1, 1]} : vector<2x4x16x16xf32> to vector<1x4x1x16xf32>
    %54 = vector.shape_cast %53 : vector<1x4x1x16xf32> to vector<4x16xf32>
    %c0_26 = arith.constant 0 : index
    %c0_27 = arith.constant 0 : index
    %c199 = arith.constant 199 : index
    %55 = vector.load %arg5[%c0_26, %c0_27, %c199] : memref<2x4x422xf32, #tpu.memory_space<vmem>>, vector<1x4x16xf32>
    %56 = vector.shape_cast %55 : vector<1x4x16xf32> to vector<4x16xf32>
    %57 = vector.shape_cast %54 : vector<4x16xf32> to vector<1x4x16xf32>
    tpu.vector_store %arg5[%c0_26, %c0_27, %c199], %57 {strides = array<i32>} : memref<2x4x422xf32, #tpu.memory_space<vmem>>, vector<1x4x16xf32>,
    %58 = vector.extract_strided_slice %2 {offsets = [0, 0, 11, 0], sizes = [1, 4, 1, 16], strides = [1, 1, 1, 1]} : vector<2x4x16x16xf32> to vector<1x4x1x16xf32>
    %59 = vector.shape_cast %58 : vector<1x4x1x16xf32> to vector<4x16xf32>
    %c0_28 = arith.constant 0 : index
    %c0_29 = arith.constant 0 : index
    %c217 = arith.constant 217 : index
    %60 = vector.load %arg5[%c0_28, %c0_29, %c217] : memref<2x4x422xf32, #tpu.memory_space<vmem>>, vector<1x4x16xf32>
    %61 = vector.shape_cast %60 : vector<1x4x16xf32> to vector<4x16xf32>
    %62 = vector.shape_cast %59 : vector<4x16xf32> to vector<1x4x16xf32>
    tpu.vector_store %arg5[%c0_28, %c0_29, %c217], %62 {strides = array<i32>} : memref<2x4x422xf32, #tpu.memory_space<vmem>>, vector<1x4x16xf32>,
    %63 = vector.extract_strided_slice %2 {offsets = [0, 0, 12, 0], sizes = [1, 4, 1, 16], strides = [1, 1, 1, 1]} : vector<2x4x16x16xf32> to vector<1x4x1x16xf32>
    %64 = vector.shape_cast %63 : vector<1x4x1x16xf32> to vector<4x16xf32>
    %c0_30 = arith.constant 0 : index
    %c0_31 = arith.constant 0 : index
    %c235 = arith.constant 235 : index
    %65 = vector.load %arg5[%c0_30, %c0_31, %c235] : memref<2x4x422xf32, #tpu.memory_space<vmem>>, vector<1x4x16xf32>
    %66 = vector.shape_cast %65 : vector<1x4x16xf32> to vector<4x16xf32>
    %67 = vector.shape_cast %64 : vector<4x16xf32> to vector<1x4x16xf32>
    tpu.vector_store %arg5[%c0_30, %c0_31, %c235], %67 {strides = array<i32>} : memref<2x4x422xf32, #tpu.memory_space<vmem>>, vector<1x4x16xf32>,
    %68 = vector.extract_strided_slice %2 {offsets = [0, 0, 13, 0], sizes = [1, 4, 1, 16], strides = [1, 1, 1, 1]} : vector<2x4x16x16xf32> to vector<1x4x1x16xf32>
    %69 = vector.shape_cast %68 : vector<1x4x1x16xf32> to vector<4x16xf32>
    %c0_32 = arith.constant 0 : index
    %c0_33 = arith.constant 0 : index
    %c253 = arith.constant 253 : index
    %70 = vector.load %arg5[%c0_32, %c0_33, %c253] : memref<2x4x422xf32, #tpu.memory_space<vmem>>, vector<1x4x16xf32>
    %71 = vector.shape_cast %70 : vector<1x4x16xf32> to vector<4x16xf32>
    %72 = vector.shape_cast %69 : vector<4x16xf32> to vector<1x4x16xf32>
    tpu.vector_store %arg5[%c0_32, %c0_33, %c253], %72 {strides = array<i32>} : memref<2x4x422xf32, #tpu.memory_space<vmem>>, vector<1x4x16xf32>,
    %73 = vector.extract_strided_slice %2 {offsets = [0, 0, 14, 0], sizes = [1, 4, 1, 16], strides = [1, 1, 1, 1]} : vector<2x4x16x16xf32> to vector<1x4x1x16xf32>
    %74 = vector.shape_cast %73 : vector<1x4x1x16xf32> to vector<4x16xf32>
    %c0_34 = arith.constant 0 : index
    %c0_35 = arith.constant 0 : index
    %c271 = arith.constant 271 : index
    %75 = vector.load %arg5[%c0_34, %c0_35, %c271] : memref<2x4x422xf32, #tpu.memory_space<vmem>>, vector<1x4x16xf32>
    %76 = vector.shape_cast %75 : vector<1x4x16xf32> to vector<4x16xf32>
    %77 = vector.shape_cast %74 : vector<4x16xf32> to vector<1x4x16xf32>
    tpu.vector_store %arg5[%c0_34, %c0_35, %c271], %77 {strides = array<i32>} : memref<2x4x422xf32, #tpu.memory_space<vmem>>, vector<1x4x16xf32>,
    %78 = vector.extract_strided_slice %2 {offsets = [0, 0, 15, 0], sizes = [1, 4, 1, 16], strides = [1, 1, 1, 1]} : vector<2x4x16x16xf32> to vector<1x4x1x16xf32>
    %79 = vector.shape_cast %78 : vector<1x4x1x16xf32> to vector<4x16xf32>
    %c0_36 = arith.constant 0 : index
    %c0_37 = arith.constant 0 : index
    %c289 = arith.constant 289 : index
    %80 = vector.load %arg5[%c0_36, %c0_37, %c289] : memref<2x4x422xf32, #tpu.memory_space<vmem>>, vector<1x4x16xf32>
    %81 = vector.shape_cast %80 : vector<1x4x16xf32> to vector<4x16xf32>
    %82 = vector.shape_cast %79 : vector<4x16xf32> to vector<1x4x16xf32>
    tpu.vector_store %arg5[%c0_36, %c0_37, %c289], %82 {strides = array<i32>} : memref<2x4x422xf32, #tpu.memory_space<vmem>>, vector<1x4x16xf32>,
    %83 = vector.extract_strided_slice %2 {offsets = [1, 0, 0, 0], sizes = [1, 4, 1, 16], strides = [1, 1, 1, 1]} : vector<2x4x16x16xf32> to vector<1x4x1x16xf32>
    %84 = vector.shape_cast %83 : vector<1x4x1x16xf32> to vector<4x16xf32>
    %c1 = arith.constant 1 : index
    %c0_38 = arith.constant 0 : index
    %c19_39 = arith.constant 19 : index
    %85 = vector.load %arg5[%c1, %c0_38, %c19_39] : memref<2x4x422xf32, #tpu.memory_space<vmem>>, vector<1x4x16xf32>
    %86 = vector.shape_cast %85 : vector<1x4x16xf32> to vector<4x16xf32>
    %87 = vector.shape_cast %84 : vector<4x16xf32> to vector<1x4x16xf32>
    tpu.vector_store %arg5[%c1, %c0_38, %c19_39], %87 {strides = array<i32>} : memref<2x4x422xf32, #tpu.memory_space<vmem>>, vector<1x4x16xf32>,
    %88 = vector.extract_strided_slice %2 {offsets = [1, 0, 1, 0], sizes = [1, 4, 1, 16], strides = [1, 1, 1, 1]} : vector<2x4x16x16xf32> to vector<1x4x1x16xf32>
    %89 = vector.shape_cast %88 : vector<1x4x1x16xf32> to vector<4x16xf32>
    %c1_40 = arith.constant 1 : index
    %c0_41 = arith.constant 0 : index
    %c37_42 = arith.constant 37 : index
    %90 = vector.load %arg5[%c1_40, %c0_41, %c37_42] : memref<2x4x422xf32, #tpu.memory_space<vmem>>, vector<1x4x16xf32>
    %91 = vector.shape_cast %90 : vector<1x4x16xf32> to vector<4x16xf32>
    %92 = vector.shape_cast %89 : vector<4x16xf32> to vector<1x4x16xf32>
    tpu.vector_store %arg5[%c1_40, %c0_41, %c37_42], %92 {strides = array<i32>} : memref<2x4x422xf32, #tpu.memory_space<vmem>>, vector<1x4x16xf32>,
    %93 = vector.extract_strided_slice %2 {offsets = [1, 0, 2, 0], sizes = [1, 4, 1, 16], strides = [1, 1, 1, 1]} : vector<2x4x16x16xf32> to vector<1x4x1x16xf32>
    %94 = vector.shape_cast %93 : vector<1x4x1x16xf32> to vector<4x16xf32>
    %c1_43 = arith.constant 1 : index
    %c0_44 = arith.constant 0 : index
    %c55_45 = arith.constant 55 : index
    %95 = vector.load %arg5[%c1_43, %c0_44, %c55_45] : memref<2x4x422xf32, #tpu.memory_space<vmem>>, vector<1x4x16xf32>
    %96 = vector.shape_cast %95 : vector<1x4x16xf32> to vector<4x16xf32>
    %97 = vector.shape_cast %94 : vector<4x16xf32> to vector<1x4x16xf32>
    tpu.vector_store %arg5[%c1_43, %c0_44, %c55_45], %97 {strides = array<i32>} : memref<2x4x422xf32, #tpu.memory_space<vmem>>, vector<1x4x16xf32>,
    %98 = vector.extract_strided_slice %2 {offsets = [1, 0, 3, 0], sizes = [1, 4, 1, 16], strides = [1, 1, 1, 1]} : vector<2x4x16x16xf32> to vector<1x4x1x16xf32>
    %99 = vector.shape_cast %98 : vector<1x4x1x16xf32> to vector<4x16xf32>
    %c1_46 = arith.constant 1 : index
    %c0_47 = arith.constant 0 : index
    %c73_48 = arith.constant 73 : index
    %100 = vector.load %arg5[%c1_46, %c0_47, %c73_48] : memref<2x4x422xf32, #tpu.memory_space<vmem>>, vector<1x4x16xf32>
    %101 = vector.shape_cast %100 : vector<1x4x16xf32> to vector<4x16xf32>
    %102 = vector.shape_cast %99 : vector<4x16xf32> to vector<1x4x16xf32>
    tpu.vector_store %arg5[%c1_46, %c0_47, %c73_48], %102 {strides = array<i32>} : memref<2x4x422xf32, #tpu.memory_space<vmem>>, vector<1x4x16xf32>,
    %103 = vector.extract_strided_slice %2 {offsets = [1, 0, 4, 0], sizes = [1, 4, 1, 16], strides = [1, 1, 1, 1]} : vector<2x4x16x16xf32> to vector<1x4x1x16xf32>
    %104 = vector.shape_cast %103 : vector<1x4x1x16xf32> to vector<4x16xf32>
    %c1_49 = arith.constant 1 : index
    %c0_50 = arith.constant 0 : index
    %c91_51 = arith.constant 91 : index
    %105 = vector.load %arg5[%c1_49, %c0_50, %c91_51] : memref<2x4x422xf32, #tpu.memory_space<vmem>>, vector<1x4x16xf32>
    %106 = vector.shape_cast %105 : vector<1x4x16xf32> to vector<4x16xf32>
    %107 = vector.shape_cast %104 : vector<4x16xf32> to vector<1x4x16xf32>
    tpu.vector_store %arg5[%c1_49, %c0_50, %c91_51], %107 {strides = array<i32>} : memref<2x4x422xf32, #tpu.memory_space<vmem>>, vector<1x4x16xf32>,
    %108 = vector.extract_strided_slice %2 {offsets = [1, 0, 5, 0], sizes = [1, 4, 1, 16], strides = [1, 1, 1, 1]} : vector<2x4x16x16xf32> to vector<1x4x1x16xf32>
    %109 = vector.shape_cast %108 : vector<1x4x1x16xf32> to vector<4x16xf32>
    %c1_52 = arith.constant 1 : index
    %c0_53 = arith.constant 0 : index
    %c109_54 = arith.constant 109 : index
    %110 = vector.load %arg5[%c1_52, %c0_53, %c109_54] : memref<2x4x422xf32, #tpu.memory_space<vmem>>, vector<1x4x16xf32>
    %111 = vector.shape_cast %110 : vector<1x4x16xf32> to vector<4x16xf32>
    %112 = vector.shape_cast %109 : vector<4x16xf32> to vector<1x4x16xf32>
    tpu.vector_store %arg5[%c1_52, %c0_53, %c109_54], %112 {strides = array<i32>} : memref<2x4x422xf32, #tpu.memory_space<vmem>>, vector<1x4x16xf32>,
    %113 = vector.extract_strided_slice %2 {offsets = [1, 0, 6, 0], sizes = [1, 4, 1, 16], strides = [1, 1, 1, 1]} : vector<2x4x16x16xf32> to vector<1x4x1x16xf32>
    %114 = vector.shape_cast %113 : vector<1x4x1x16xf32> to vector<4x16xf32>
    %c1_55 = arith.constant 1 : index
    %c0_56 = arith.constant 0 : index
    %c127_57 = arith.constant 127 : index
    %115 = vector.load %arg5[%c1_55, %c0_56, %c127_57] : memref<2x4x422xf32, #tpu.memory_space<vmem>>, vector<1x4x16xf32>
    %116 = vector.shape_cast %115 : vector<1x4x16xf32> to vector<4x16xf32>
    %117 = vector.shape_cast %114 : vector<4x16xf32> to vector<1x4x16xf32>
    tpu.vector_store %arg5[%c1_55, %c0_56, %c127_57], %117 {strides = array<i32>} : memref<2x4x422xf32, #tpu.memory_space<vmem>>, vector<1x4x16xf32>,
    %118 = vector.extract_strided_slice %2 {offsets = [1, 0, 7, 0], sizes = [1, 4, 1, 16], strides = [1, 1, 1, 1]} : vector<2x4x16x16xf32> to vector<1x4x1x16xf32>
    %119 = vector.shape_cast %118 : vector<1x4x1x16xf32> to vector<4x16xf32>
    %c1_58 = arith.constant 1 : index
    %c0_59 = arith.constant 0 : index
    %c145_60 = arith.constant 145 : index
    %120 = vector.load %arg5[%c1_58, %c0_59, %c145_60] : memref<2x4x422xf32, #tpu.memory_space<vmem>>, vector<1x4x16xf32>
    %121 = vector.shape_cast %120 : vector<1x4x16xf32> to vector<4x16xf32>
    %122 = vector.shape_cast %119 : vector<4x16xf32> to vector<1x4x16xf32>
    tpu.vector_store %arg5[%c1_58, %c0_59, %c145_60], %122 {strides = array<i32>} : memref<2x4x422xf32, #tpu.memory_space<vmem>>, vector<1x4x16xf32>,
    %123 = vector.extract_strided_slice %2 {offsets = [1, 0, 8, 0], sizes = [1, 4, 1, 16], strides = [1, 1, 1, 1]} : vector<2x4x16x16xf32> to vector<1x4x1x16xf32>
    %124 = vector.shape_cast %123 : vector<1x4x1x16xf32> to vector<4x16xf32>
    %c1_61 = arith.constant 1 : index
    %c0_62 = arith.constant 0 : index
    %c163_63 = arith.constant 163 : index
    %125 = vector.load %arg5[%c1_61, %c0_62, %c163_63] : memref<2x4x422xf32, #tpu.memory_space<vmem>>, vector<1x4x16xf32>
    %126 = vector.shape_cast %125 : vector<1x4x16xf32> to vector<4x16xf32>
    %127 = vector.shape_cast %124 : vector<4x16xf32> to vector<1x4x16xf32>
    tpu.vector_store %arg5[%c1_61, %c0_62, %c163_63], %127 {strides = array<i32>} : memref<2x4x422xf32, #tpu.memory_space<vmem>>, vector<1x4x16xf32>,
    %128 = vector.extract_strided_slice %2 {offsets = [1, 0, 9, 0], sizes = [1, 4, 1, 16], strides = [1, 1, 1, 1]} : vector<2x4x16x16xf32> to vector<1x4x1x16xf32>
    %129 = vector.shape_cast %128 : vector<1x4x1x16xf32> to vector<4x16xf32>
    %c1_64 = arith.constant 1 : index
    %c0_65 = arith.constant 0 : index
    %c181_66 = arith.constant 181 : index
    %130 = vector.load %arg5[%c1_64, %c0_65, %c181_66] : memref<2x4x422xf32, #tpu.memory_space<vmem>>, vector<1x4x16xf32>
    %131 = vector.shape_cast %130 : vector<1x4x16xf32> to vector<4x16xf32>
    %132 = vector.shape_cast %129 : vector<4x16xf32> to vector<1x4x16xf32>
    tpu.vector_store %arg5[%c1_64, %c0_65, %c181_66], %132 {strides = array<i32>} : memref<2x4x422xf32, #tpu.memory_space<vmem>>, vector<1x4x16xf32>,
    %133 = vector.extract_strided_slice %2 {offsets = [1, 0, 10, 0], sizes = [1, 4, 1, 16], strides = [1, 1, 1, 1]} : vector<2x4x16x16xf32> to vector<1x4x1x16xf32>
    %134 = vector.shape_cast %133 : vector<1x4x1x16xf32> to vector<4x16xf32>
    %c1_67 = arith.constant 1 : index
    %c0_68 = arith.constant 0 : index
    %c199_69 = arith.constant 199 : index
    %135 = vector.load %arg5[%c1_67, %c0_68, %c199_69] : memref<2x4x422xf32, #tpu.memory_space<vmem>>, vector<1x4x16xf32>
    %136 = vector.shape_cast %135 : vector<1x4x16xf32> to vector<4x16xf32>
    %137 = vector.shape_cast %134 : vector<4x16xf32> to vector<1x4x16xf32>
    tpu.vector_store %arg5[%c1_67, %c0_68, %c199_69], %137 {strides = array<i32>} : memref<2x4x422xf32, #tpu.memory_space<vmem>>, vector<1x4x16xf32>,
    %138 = vector.extract_strided_slice %2 {offsets = [1, 0, 11, 0], sizes = [1, 4, 1, 16], strides = [1, 1, 1, 1]} : vector<2x4x16x16xf32> to vector<1x4x1x16xf32>
    %139 = vector.shape_cast %138 : vector<1x4x1x16xf32> to vector<4x16xf32>
    %c1_70 = arith.constant 1 : index
    %c0_71 = arith.constant 0 : index
    %c217_72 = arith.constant 217 : index
    %140 = vector.load %arg5[%c1_70, %c0_71, %c217_72] : memref<2x4x422xf32, #tpu.memory_space<vmem>>, vector<1x4x16xf32>
    %141 = vector.shape_cast %140 : vector<1x4x16xf32> to vector<4x16xf32>
    %142 = vector.shape_cast %139 : vector<4x16xf32> to vector<1x4x16xf32>
    tpu.vector_store %arg5[%c1_70, %c0_71, %c217_72], %142 {strides = array<i32>} : memref<2x4x422xf32, #tpu.memory_space<vmem>>, vector<1x4x16xf32>,
    %143 = vector.extract_strided_slice %2 {offsets = [1, 0, 12, 0], sizes = [1, 4, 1, 16], strides = [1, 1, 1, 1]} : vector<2x4x16x16xf32> to vector<1x4x1x16xf32>
    %144 = vector.shape_cast %143 : vector<1x4x1x16xf32> to vector<4x16xf32>
    %c1_73 = arith.constant 1 : index
    %c0_74 = arith.constant 0 : index
    %c235_75 = arith.constant 235 : index
    %145 = vector.load %arg5[%c1_73, %c0_74, %c235_75] : memref<2x4x422xf32, #tpu.memory_space<vmem>>, vector<1x4x16xf32>
    %146 = vector.shape_cast %145 : vector<1x4x16xf32> to vector<4x16xf32>
    %147 = vector.shape_cast %144 : vector<4x16xf32> to vector<1x4x16xf32>
    tpu.vector_store %arg5[%c1_73, %c0_74, %c235_75], %147 {strides = array<i32>} : memref<2x4x422xf32, #tpu.memory_space<vmem>>, vector<1x4x16xf32>,
    %148 = vector.extract_strided_slice %2 {offsets = [1, 0, 13, 0], sizes = [1, 4, 1, 16], strides = [1, 1, 1, 1]} : vector<2x4x16x16xf32> to vector<1x4x1x16xf32>
    %149 = vector.shape_cast %148 : vector<1x4x1x16xf32> to vector<4x16xf32>
    %c1_76 = arith.constant 1 : index
    %c0_77 = arith.constant 0 : index
    %c253_78 = arith.constant 253 : index
    %150 = vector.load %arg5[%c1_76, %c0_77, %c253_78] : memref<2x4x422xf32, #tpu.memory_space<vmem>>, vector<1x4x16xf32>
    %151 = vector.shape_cast %150 : vector<1x4x16xf32> to vector<4x16xf32>
    %152 = vector.shape_cast %149 : vector<4x16xf32> to vector<1x4x16xf32>
    tpu.vector_store %arg5[%c1_76, %c0_77, %c253_78], %152 {strides = array<i32>} : memref<2x4x422xf32, #tpu.memory_space<vmem>>, vector<1x4x16xf32>,
    %153 = vector.extract_strided_slice %2 {offsets = [1, 0, 14, 0], sizes = [1, 4, 1, 16], strides = [1, 1, 1, 1]} : vector<2x4x16x16xf32> to vector<1x4x1x16xf32>
    %154 = vector.shape_cast %153 : vector<1x4x1x16xf32> to vector<4x16xf32>
    %c1_79 = arith.constant 1 : index
    %c0_80 = arith.constant 0 : index
    %c271_81 = arith.constant 271 : index
    %155 = vector.load %arg5[%c1_79, %c0_80, %c271_81] : memref<2x4x422xf32, #tpu.memory_space<vmem>>, vector<1x4x16xf32>
    %156 = vector.shape_cast %155 : vector<1x4x16xf32> to vector<4x16xf32>
    %157 = vector.shape_cast %154 : vector<4x16xf32> to vector<1x4x16xf32>
    tpu.vector_store %arg5[%c1_79, %c0_80, %c271_81], %157 {strides = array<i32>} : memref<2x4x422xf32, #tpu.memory_space<vmem>>, vector<1x4x16xf32>,
    %158 = vector.extract_strided_slice %2 {offsets = [1, 0, 15, 0], sizes = [1, 4, 1, 16], strides = [1, 1, 1, 1]} : vector<2x4x16x16xf32> to vector<1x4x1x16xf32>
    %159 = vector.shape_cast %158 : vector<1x4x1x16xf32> to vector<4x16xf32>
    %c1_82 = arith.constant 1 : index
    %c0_83 = arith.constant 0 : index
    %c289_84 = arith.constant 289 : index
    %160 = vector.load %arg5[%c1_82, %c0_83, %c289_84] : memref<2x4x422xf32, #tpu.memory_space<vmem>>, vector<1x4x16xf32>
    %161 = vector.shape_cast %160 : vector<1x4x16xf32> to vector<4x16xf32>
    %162 = vector.shape_cast %159 : vector<4x16xf32> to vector<1x4x16xf32>
    tpu.vector_store %arg5[%c1_82, %c0_83, %c289_84], %162 {strides = array<i32>} : memref<2x4x422xf32, #tpu.memory_space<vmem>>, vector<1x4x16xf32>,
    %c0_85 = arith.constant 0 : index
    %c0_86 = arith.constant 0 : index
    %c0_87 = arith.constant 0 : index
    %163 = vector.load %arg5[%c0_85, %c0_86, %c0_87] : memref<2x4x422xf32, #tpu.memory_space<vmem>>, vector<1x4x384xf32>
    %164 = vector.shape_cast %163 : vector<1x4x384xf32> to vector<4x384xf32>
    %c0_88 = arith.constant 0 : index
    %c0_89 = arith.constant 0 : index
    %c1_90 = arith.constant 1 : index
    %165 = vector.load %arg5[%c0_88, %c0_89, %c1_90] : memref<2x4x422xf32, #tpu.memory_space<vmem>>, vector<1x4x384xf32>
    %166 = vector.shape_cast %165 : vector<1x4x384xf32> to vector<4x384xf32>
    %c0_91 = arith.constant 0 : index
    %c0_92 = arith.constant 0 : index
    %c2 = arith.constant 2 : index
    %167 = vector.load %arg5[%c0_91, %c0_92, %c2] : memref<2x4x422xf32, #tpu.memory_space<vmem>>, vector<1x4x384xf32>
    %168 = vector.shape_cast %167 : vector<1x4x384xf32> to vector<4x384xf32>
    %c0_93 = arith.constant 0 : index
    %c0_94 = arith.constant 0 : index
    %c18 = arith.constant 18 : index
    %169 = vector.load %arg5[%c0_93, %c0_94, %c18] : memref<2x4x422xf32, #tpu.memory_space<vmem>>, vector<1x4x384xf32>
    %170 = vector.shape_cast %169 : vector<1x4x384xf32> to vector<4x384xf32>
    %c0_95 = arith.constant 0 : index
    %c0_96 = arith.constant 0 : index
    %c19_97 = arith.constant 19 : index
    %171 = vector.load %arg5[%c0_95, %c0_96, %c19_97] : memref<2x4x422xf32, #tpu.memory_space<vmem>>, vector<1x4x384xf32>
    %172 = vector.shape_cast %171 : vector<1x4x384xf32> to vector<4x384xf32>
    %c0_98 = arith.constant 0 : index
    %c0_99 = arith.constant 0 : index
    %c20 = arith.constant 20 : index
    %173 = vector.load %arg5[%c0_98, %c0_99, %c20] : memref<2x4x422xf32, #tpu.memory_space<vmem>>, vector<1x4x384xf32>
    %174 = vector.shape_cast %173 : vector<1x4x384xf32> to vector<4x384xf32>
    %c0_100 = arith.constant 0 : index
    %c0_101 = arith.constant 0 : index
    %c36 = arith.constant 36 : index
    %175 = vector.load %arg5[%c0_100, %c0_101, %c36] : memref<2x4x422xf32, #tpu.memory_space<vmem>>, vector<1x4x384xf32>
    %176 = vector.shape_cast %175 : vector<1x4x384xf32> to vector<4x384xf32>
    %c0_102 = arith.constant 0 : index
    %c0_103 = arith.constant 0 : index
    %c37_104 = arith.constant 37 : index
    %177 = vector.load %arg5[%c0_102, %c0_103, %c37_104] : memref<2x4x422xf32, #tpu.memory_space<vmem>>, vector<1x4x384xf32>
    %178 = vector.shape_cast %177 : vector<1x4x384xf32> to vector<4x384xf32>
    %c0_105 = arith.constant 0 : index
    %c0_106 = arith.constant 0 : index
    %c38 = arith.constant 38 : index
    %179 = vector.load %arg5[%c0_105, %c0_106, %c38] : memref<2x4x422xf32, #tpu.memory_space<vmem>>, vector<1x4x384xf32>
    %180 = vector.shape_cast %179 : vector<1x4x384xf32> to vector<4x384xf32>
    %181 = tpu.concatenate %164, %166, %168, %170, %172, %174, %176, %178, %180 in 0 : vector<4x384xf32>, vector<4x384xf32>, vector<4x384xf32>, vector<4x384xf32>, vector<4x384xf32>, vector<4x384xf32>, vector<4x384xf32>, vector<4x384xf32>, vector<4x384xf32> -> vector<36x384xf32>
    %182 = arith.truncf %181 : vector<36x384xf32> to vector<36x384xbf16>
    %c1_107 = arith.constant 1 : index
    %c0_108 = arith.constant 0 : index
    %c0_109 = arith.constant 0 : index
    %183 = vector.load %arg5[%c1_107, %c0_108, %c0_109] : memref<2x4x422xf32, #tpu.memory_space<vmem>>, vector<1x4x384xf32>
    %184 = vector.shape_cast %183 : vector<1x4x384xf32> to vector<4x384xf32>
    %c1_110 = arith.constant 1 : index
    %c0_111 = arith.constant 0 : index
    %c1_112 = arith.constant 1 : index
    %185 = vector.load %arg5[%c1_110, %c0_111, %c1_112] : memref<2x4x422xf32, #tpu.memory_space<vmem>>, vector<1x4x384xf32>
    %186 = vector.shape_cast %185 : vector<1x4x384xf32> to vector<4x384xf32>
    %c1_113 = arith.constant 1 : index
    %c0_114 = arith.constant 0 : index
    %c2_115 = arith.constant 2 : index
    %187 = vector.load %arg5[%c1_113, %c0_114, %c2_115] : memref<2x4x422xf32, #tpu.memory_space<vmem>>, vector<1x4x384xf32>
    %188 = vector.shape_cast %187 : vector<1x4x384xf32> to vector<4x384xf32>
    %c1_116 = arith.constant 1 : index
    %c0_117 = arith.constant 0 : index
    %c18_118 = arith.constant 18 : index
    %189 = vector.load %arg5[%c1_116, %c0_117, %c18_118] : memref<2x4x422xf32, #tpu.memory_space<vmem>>, vector<1x4x384xf32>
    %190 = vector.shape_cast %189 : vector<1x4x384xf32> to vector<4x384xf32>
    %c1_119 = arith.constant 1 : index
    %c0_120 = arith.constant 0 : index
    %c19_121 = arith.constant 19 : index
    %191 = vector.load %arg5[%c1_119, %c0_120, %c19_121] : memref<2x4x422xf32, #tpu.memory_space<vmem>>, vector<1x4x384xf32>
    %192 = vector.shape_cast %191 : vector<1x4x384xf32> to vector<4x384xf32>
    %c1_122 = arith.constant 1 : index
    %c0_123 = arith.constant 0 : index
    %c20_124 = arith.constant 20 : index
    %193 = vector.load %arg5[%c1_122, %c0_123, %c20_124] : memref<2x4x422xf32, #tpu.memory_space<vmem>>, vector<1x4x384xf32>
    %194 = vector.shape_cast %193 : vector<1x4x384xf32> to vector<4x384xf32>
    %c1_125 = arith.constant 1 : index
    %c0_126 = arith.constant 0 : index
    %c36_127 = arith.constant 36 : index
    %195 = vector.load %arg5[%c1_125, %c0_126, %c36_127] : memref<2x4x422xf32, #tpu.memory_space<vmem>>, vector<1x4x384xf32>
    %196 = vector.shape_cast %195 : vector<1x4x384xf32> to vector<4x384xf32>
    %c1_128 = arith.constant 1 : index
    %c0_129 = arith.constant 0 : index
    %c37_130 = arith.constant 37 : index
    %197 = vector.load %arg5[%c1_128, %c0_129, %c37_130] : memref<2x4x422xf32, #tpu.memory_space<vmem>>, vector<1x4x384xf32>
    %198 = vector.shape_cast %197 : vector<1x4x384xf32> to vector<4x384xf32>
    %c1_131 = arith.constant 1 : index
    %c0_132 = arith.constant 0 : index
    %c38_133 = arith.constant 38 : index
    %199 = vector.load %arg5[%c1_131, %c0_132, %c38_133] : memref<2x4x422xf32, #tpu.memory_space<vmem>>, vector<1x4x384xf32>
    %200 = vector.shape_cast %199 : vector<1x4x384xf32> to vector<4x384xf32>
    %201 = tpu.concatenate %184, %186, %188, %190, %192, %194, %196, %198, %200 in 0 : vector<4x384xf32>, vector<4x384xf32>, vector<4x384xf32>, vector<4x384xf32>, vector<4x384xf32>, vector<4x384xf32>, vector<4x384xf32>, vector<4x384xf32>, vector<4x384xf32> -> vector<36x384xf32>
    %202 = arith.truncf %201 : vector<36x384xf32> to vector<36x384xbf16>
    %203 = tpu.concatenate %182, %202 in 1 : vector<36x384xbf16>, vector<36x384xbf16> -> vector<36x768xbf16>
    %c0_134 = arith.constant 0 : index
    %c0_135 = arith.constant 0 : index
    %204 = vector.load %arg2[%c0_134, %c0_135] : memref<8x36xbf16, #tpu.memory_space<vmem>>, vector<8x36xbf16>
    %cst_136 = arith.constant dense<0.000000e+00> : vector<8x768xf32>
    %205 = tpu.matmul %204, %203, %cst_136 {dimension_numbers = #tpu.dot_dimension_numbers<[1], [0], [0], [1], [0, 0, 1, 1], [], []>} : vector<8x36xbf16>, vector<36x768xbf16>, vector<8x768xf32> -> vector<8x768xf32>
    %c0_137 = arith.constant 0 : index
    %c0_138 = arith.constant 0 : index
    %206 = vector.load %arg3[%c0_137, %c0_138] : memref<8x1xf32, #tpu.memory_space<vmem>>, vector<8x1xf32>
    %207 = vector.broadcast %206 : vector<8x1xf32> to vector<8x768xf32>
    %208 = arith.addf %205, %207 : vector<8x768xf32>
    %209 = vector.extract_strided_slice %208 {offsets = [0, 0], sizes = [8, 384], strides = [1, 1]} : vector<8x768xf32> to vector<8x384xf32>
    %c0_139 = arith.constant 0 : index
    %c0_140 = arith.constant 0 : index
    %c0_141 = arith.constant 0 : index
    %210 = vector.load %arg4[%c0_139, %c0_140, %c0_141] : memref<2x8x384xf32, #tpu.memory_space<vmem>>, vector<1x8x384xf32>
    %211 = vector.shape_cast %210 : vector<1x8x384xf32> to vector<8x384xf32>
    %212 = vector.shape_cast %209 : vector<8x384xf32> to vector<1x8x384xf32>
    tpu.vector_store %arg4[%c0_139, %c0_140, %c0_141], %212 {strides = array<i32>} : memref<2x8x384xf32, #tpu.memory_space<vmem>>, vector<1x8x384xf32>,
    %213 = vector.extract_strided_slice %208 {offsets = [0, 384], sizes = [8, 384], strides = [1, 1]} : vector<8x768xf32> to vector<8x384xf32>
    %c1_142 = arith.constant 1 : index
    %c0_143 = arith.constant 0 : index
    %c0_144 = arith.constant 0 : index
    %214 = vector.load %arg4[%c1_142, %c0_143, %c0_144] : memref<2x8x384xf32, #tpu.memory_space<vmem>>, vector<1x8x384xf32>
    %215 = vector.shape_cast %214 : vector<1x8x384xf32> to vector<8x384xf32>
    %216 = vector.shape_cast %213 : vector<8x384xf32> to vector<1x8x384xf32>
    tpu.vector_store %arg4[%c1_142, %c0_143, %c0_144], %216 {strides = array<i32>} : memref<2x8x384xf32, #tpu.memory_space<vmem>>, vector<1x8x384xf32>,
    return
  }
  func.func @transform_0(%arg0: i32) -> (i32, i32, i32, i32) {
    %c0_i32 = arith.constant 0 : i32
    %c0_i32_0 = arith.constant 0 : i32
    %c0_i32_1 = arith.constant 0 : i32
    %c0_i32_2 = arith.constant 0 : i32
    %c0_i32_3 = arith.constant 0 : i32
    return %c0_i32, %c0_i32_0, %c0_i32_1, %c0_i32_2 : i32, i32, i32, i32
  }
  func.func @transform_1(%arg0: i32) -> (i32, i32) {
    %c0_i32 = arith.constant 0 : i32
    %c0_i32_0 = arith.constant 0 : i32
    %c0_i32_1 = arith.constant 0 : i32
    return %c0_i32, %c0_i32_0 : i32, i32
  }
  func.func @transform_2(%arg0: i32) -> (i32, i32) {
    %c0_i32 = arith.constant 0 : i32
    %c0_i32_0 = arith.constant 0 : i32
    %c0_i32_1 = arith.constant 0 : i32
    return %c0_i32, %c0_i32_0 : i32, i32
  }
  func.func @transform_3(%arg0: i32) -> (i32, i32, i32) {
    %c0_i32 = arith.constant 0 : i32
    %c0_i32_0 = arith.constant 0 : i32
    %c0_i32_1 = arith.constant 0 : i32
    %c0_i32_2 = arith.constant 0 : i32
    return %c0_i32, %c0_i32_0, %c0_i32_1 : i32, i32, i32
  }
}

</mosaic_0001>

<llo_original>
// kernel: tpu_custom_call.1
$region0: #{tpu_custom_call.1}
  #allocation0 [shape = 'u32[]', space=smem, size = 0x4, offset = 0x4, fixed_abs, tag = 'smem constant byte address 0x4 - core index']
  #allocation1 [shape = 'u32[72,128]{1,0:T(1,128)}', space=vmem, size = 0x9000, scoped, tag = 'internal scratch']
  #allocation2 [shape = 'f32[2,4,422]{2,1,0:T(4,128)}', space=vmem, size = 0x4000, scoped, tag = 'scratch operand']
  %s0 = inlined_call_operand.hbm [shape: f32[2,4,16,16], index: 0, kind: input, shape index: {}]
  %s1 = inlined_call_operand.vmem [shape: bf16[8,36], index: 1, kind: input, shape index: {}]
  %s2 = inlined_call_operand.vmem [shape: f32[8,1], index: 2, kind: input, shape index: {}]
  %s3 = inlined_call_operand.hbm [shape: f32[2,8,384], index: 3, kind: output, shape index: {}]
  %s4 = sld [smem:[#allocation0]]
  $region26: #{tpu_custom_call.1} parent=0
    _
  %s6 = ssub.s32 1, %s4
  %s7 = scalar_select 0, %s6, %s4
  $region1: #{tpu_custom_call.1} parent=0
    #allocation3 [shape = 'u8[65536]{0}', space=vmem, size = 0x10000, scoped, tag = 'input window, operand 0, single buffered']
    #allocation4 [shape = 's32[1]{0}', space=sflag, size = 0x4, scoped, tag = 'scoped memory for tpu_custom_call.1']
    #allocation5 [shape = 's32[1]{0}', space=sflag, size = 0x4, scoped, tag = 'scoped memory for tpu_custom_call.1']
    #allocation6 [shape = 'u8[24576]{0}', space=vmem, size = 0x6000, scoped, tag = 'output window, operand 0, single buffered']
    %8 = vsyncpa [#allocation4], 0
    %9 = vsyncpa [#allocation5], 0
    // Predicated region
    $region2: #{tpu_custom_call.1} parent=1 // pred_check
      _
    $region3: #{tpu_custom_call.1} parent=1 // pred_check_branch
      %11 = sbr.rel (0) target = $region5
    $region4: #{tpu_custom_call.1} parent=1 // pred_region
      %13 = vsyncadd [#allocation4], 0
      %s14 = sshll.u32 %s0, 4
      %s15 = int_to_ptr.hbm [resolvable:$true] %s14
      %s16 = sshll.u32 [#allocation3], 4
      %s17 = int_to_ptr.vmem [resolvable:$true] %s16
      %22 = dma.hbm_to_vmem [thread:$0]  %s15, 2048, %s17, [#allocation4], 128, 128, 8
    $region5: #{tpu_custom_call.1} parent=1 // pred_fallthru
      _
    // Predicated region
    $region6: #{tpu_custom_call.1} parent=1 // pred_check
      _
    $region7: #{tpu_custom_call.1} parent=1 // pred_check_branch
      %24 = sbr.rel (0) target = $region9
    $region8: #{tpu_custom_call.1} parent=1 // pred_region
      _
    $region9: #{tpu_custom_call.1} parent=1 // pred_fallthru
      _
    // Predicated region
    $region10: #{tpu_custom_call.1} parent=1 // pred_check
      _
    $region11: #{tpu_custom_call.1} parent=1 // pred_check_branch
      %26 = sbr.rel (0) target = $region13
    $region12: #{tpu_custom_call.1} parent=1 // pred_region
      _
    $region13: #{tpu_custom_call.1} parent=1 // pred_fallthru
      _
    // Predicated region
    $region14: #{tpu_custom_call.1} parent=1 // pred_check
      _
    $region15: #{tpu_custom_call.1} parent=1 // pred_check_branch
      %28 = sbr.rel (0) target = $region17
    $region16: #{tpu_custom_call.1} parent=1 // pred_region
      %30 = dma.done [#allocation4], 2048
    $region17: #{tpu_custom_call.1} parent=1 // pred_fallthru
      _
    %32 = vst [vmem:[#allocation2] sm:$0xff] 0.0
    %vm33 = vcmask 1043456
    %vm34 = vcmask 310276
    %vm35 = vmor %vm34, %vm33
    %36 = vst.msk [vmem:[#allocation2 + $0x8] sm:$0xff] %vm35, 0.0
    %37 = vst [vmem:[#allocation2 + $0x10] sm:$0xff] 0.0
    %38 = vst.msk [vmem:[#allocation2 + $0x18] sm:$0xff] %vm35, 0.0
    %v39 = vld [vmem:[#allocation3] sm:$0xff]
    %v40 = vld [vmem:[#allocation3 + $0x8] sm:$0xff]
    %v41 = vld [vmem:[#allocation3 + $0x10] sm:$0xff]
    %v42 = vld [vmem:[#allocation3 + $0x18] sm:$0xff]
    %v43 = vld [vmem:[#allocation3 + $0x20] sm:$0xff]
    %v44 = vld [vmem:[#allocation3 + $0x28] sm:$0xff]
    %v45 = vld [vmem:[#allocation3 + $0x30] sm:$0xff]
    %v46 = vld [vmem:[#allocation3 + $0x38] sm:$0xff]
    %v47 = vld [vmem:[#allocation3 + $0x40] sm:$0xff]
    %v48 = vld [vmem:[#allocation3 + $0x48] sm:$0xff]
    %v49 = vld [vmem:[#allocation3 + $0x50] sm:$0xff]
    %v50 = vld [vmem:[#allocation3 + $0x58] sm:$0xff]
    %v51 = vld [vmem:[#allocation3 + $0x60] sm:$0xff]
    %v52 = vld [vmem:[#allocation3 + $0x68] sm:$0xff]
    %v53 = vld [vmem:[#allocation3 + $0x70] sm:$0xff]
    %v54 = vld [vmem:[#allocation3 + $0x78] sm:$0xff]
    %v59 = vrot.slane %v41, 7
    %vm60 = vcmask 1041409
    %v61 = vsel %vm60, %v59, %v39
    %vm62 = vcmask 1045509
    %v63 = vsel %vm62, %v59, %v61
    %v64 = vrot.slane %v43, 6
    %vm65 = vcmask 1042434
    %v66 = vsel %vm65, %v64, %v63
    %vm67 = vcmask 1046534
    %v68 = vsel %vm67, %v64, %v66
    %v69 = vrot.slane %v45, 5
    %vm70 = vcmask 1043459
    %v71 = vsel %vm70, %v69, %v68
    %vm72 = vcmask 1047559
    %v73 = vsel %vm72, %v69, %v71
    %74 = vrot.lane.b32.xlu0 %v73, 19
    %v75 = vpop.permute.xlu0 %74
    %vm77 = vcmask 281752
    %78 = vst.msk [vmem:[#allocation2] sm:$0xf] %vm77, %v75
    %v79 = vrot.slane %v39, 1
    %v80 = vsel %vm60, %v41, %v79
    %v81 = vsel %vm62, %v41, %v80
    %v82 = vrot.slane %v43, 7
    %v83 = vsel %vm65, %v82, %v81
    %v84 = vsel %vm67, %v82, %v83
    %v85 = vrot.slane %v45, 6
    %v86 = vsel %vm70, %v85, %v84
    %v87 = vsel %vm72, %v85, %v86
    %88 = vrot.lane.b32.xlu0 %v87, 37
    %v89 = vpop.permute.xlu0 %88
    %vm91 = vcmask 429352
    %92 = vst.msk [vmem:[#allocation2] sm:$0xf] %vm91, %v89
    %v93 = vrot.slane %v39, 2
    %v94 = vrot.slane %v41, 1
    %v95 = vsel %vm60, %v94, %v93
    %v96 = vsel %vm62, %v94, %v95
    %v97 = vsel %vm65, %v43, %v96
    %v98 = vsel %vm67, %v43, %v97
    %v99 = vrot.slane %v45, 7
    %v100 = vsel %vm70, %v99, %v98
    %v101 = vsel %vm72, %v99, %v100
    %102 = vrot.lane.b32.xlu0 %v101, 55
    %v103 = vpop.permute.xlu0 %102
    %vm105 = vcmask 576952
    %106 = vst.msk [vmem:[#allocation2] sm:$0xf] %vm105, %v103
    %v107 = vrot.slane %v39, 3
    %v108 = vrot.slane %v41, 2
    %v109 = vsel %vm60, %v108, %v107
    %v110 = vsel %vm62, %v108, %v109
    %v111 = vrot.slane %v43, 1
    %v112 = vsel %vm65, %v111, %v110
    %v113 = vsel %vm67, %v111, %v112
    %v114 = vsel %vm70, %v45, %v113
    %v115 = vsel %vm72, %v45, %v114
    %116 = vrot.lane.b32.xlu0 %v115, 73
    %v117 = vpop.permute.xlu0 %116
    %vm119 = vcmask 724552
    %120 = vst.msk [vmem:[#allocation2] sm:$0xf] %vm119, %v117
    %121 = vst.sshfl [vmem:[#allocation1] sm:$0xff pattern:$0x75316420] %v39
    %s122 = scalar_lea.vmem [#allocation1], 1
    %v123 = vld [vmem:[%s122] ss:$2 sm:$0xff]
    %124 = vst.sshfl [vmem:[#allocation1 + $0x10] sm:$0xff pattern:$0x75316420] %v41
    %s125 = scalar_lea.vmem [#allocation1], 17
    %v126 = vld [vmem:[%s125] ss:$2 sm:$0xff]
    %127 = vst.sshfl [vmem:[#allocation1 + $0x20] sm:$0xff pattern:$0x75316420] %v43
    %s128 = scalar_lea.vmem [#allocation1], 33
    %v129 = vld [vmem:[%s128] ss:$2 sm:$0xff]
    %130 = vst.sshfl [vmem:[#allocation1 + $0x30] sm:$0xff pattern:$0x75316420] %v45
    %s131 = scalar_lea.vmem [#allocation1], 49
    %v132 = vld [vmem:[%s131] ss:$2 sm:$0xff]
    %v133 = vrot.slane %v126, 7
    %v134 = vsel %vm60, %v133, %v123
    %v135 = vsel %vm62, %v133, %v134
    %v136 = vrot.slane %v129, 6
    %v137 = vsel %vm65, %v136, %v135
    %v138 = vsel %vm67, %v136, %v137
    %v139 = vrot.slane %v132, 5
    %v140 = vsel %vm70, %v139, %v138
    %v141 = vsel %vm72, %v139, %v140
    %142 = vrot.lane.b32.xlu0 %v141, 91
    %v143 = vpop.permute.xlu0 %142
    %vm145 = vcmask 872152
    %146 = vst.msk [vmem:[#allocation2] sm:$0xf] %vm145, %v143
    %147 = vst.sshfl [vmem:[#allocation1] sm:$0xff pattern:$0x75316420] %v39
    %s148 = scalar_lea.vmem [#allocation1], 1
    %v149 = vld [vmem:[%s148] ss:$2 sm:$0xff]
    %150 = vst.sshfl [vmem:[#allocation1 + $0x10] sm:$0xff pattern:$0x75316420] %v41
    %s151 = scalar_lea.vmem [#allocation1], 17
    %v152 = vld [vmem:[%s151] ss:$2 sm:$0xff]
    %153 = vst.sshfl [vmem:[#allocation1 + $0x20] sm:$0xff pattern:$0x75316420] %v43
    %s154 = scalar_lea.vmem [#allocation1], 33
    %v155 = vld [vmem:[%s154] ss:$2 sm:$0xff]
    %156 = vst.sshfl [vmem:[#allocation1 + $0x30] sm:$0xff pattern:$0x75316420] %v45
    %s157 = scalar_lea.vmem [#allocation1], 49
    %v158 = vld [vmem:[%s157] ss:$2 sm:$0xff]
    %v159 = vrot.slane %v149, 1
    %v160 = vsel %vm60, %v152, %v159
    %v161 = vsel %vm62, %v152, %v160
    %v162 = vrot.slane %v155, 7
    %v163 = vsel %vm65, %v162, %v161
    %v164 = vsel %vm67, %v162, %v163
    %v165 = vrot.slane %v158, 6
    %v166 = vsel %vm70, %v165, %v164
    %v167 = vsel %vm72, %v165, %v166
    %168 = vrot.lane.b32.xlu0 %v167, 109
    %v169 = vpop.permute.xlu0 %168
    %vm171 = vcmask 1019752
    %172 = vst.msk [vmem:[#allocation2] sm:$0xf] %vm171, %v169
    %173 = vst.sshfl [vmem:[#allocation1] sm:$0xff pattern:$0x75316420] %v39
    %s174 = scalar_lea.vmem [#allocation1], 1
    %v175 = vld [vmem:[%s174] ss:$2 sm:$0xff]
    %176 = vst.sshfl [vmem:[#allocation1 + $0x10] sm:$0xff pattern:$0x75316420] %v41
    %s177 = scalar_lea.vmem [#allocation1], 17
    %v178 = vld [vmem:[%s177] ss:$2 sm:$0xff]
    %179 = vst.sshfl [vmem:[#allocation1 + $0x20] sm:$0xff pattern:$0x75316420] %v43
    %s180 = scalar_lea.vmem [#allocation1], 33
    %v181 = vld [vmem:[%s180] ss:$2 sm:$0xff]
    %182 = vst.sshfl [vmem:[#allocation1 + $0x30] sm:$0xff pattern:$0x75316420] %v45
    %s183 = scalar_lea.vmem [#allocation1], 49
    %v184 = vld [vmem:[%s183] ss:$2 sm:$0xff]
    %v185 = vrot.slane %v175, 2
    %v186 = vrot.slane %v178, 1
    %v187 = vsel %vm60, %v186, %v185
    %v188 = vsel %vm62, %v186, %v187
    %v189 = vsel %vm65, %v181, %v188
    %v190 = vsel %vm67, %v181, %v189
    %v191 = vrot.slane %v184, 7
    %v192 = vsel %vm70, %v191, %v190
    %v193 = vsel %vm72, %v191, %v192
    %194 = vrot.lane.b32.xlu0 %v193, 127
    %v195 = vpop.permute.xlu0 %194
    %v196 = vrot.slane %v195, 4
    %vm197 = vcmask 1039360
    %v198 = vsel %vm197, %v196, %v195
    %vm200 = vcmask 1044472
    %vm201 = vcmask 121860
    %vm202 = vmor %vm201, %vm200
    %203 = vst.msk [vmem:[#allocation2] sm:$0xff] %vm202, %v198
    %204 = vst.sshfl [vmem:[#allocation1] sm:$0xff pattern:$0x75316420] %v39
    %s205 = scalar_lea.vmem [#allocation1], 1
    %v206 = vld [vmem:[%s205] ss:$2 sm:$0xff]
    %207 = vst.sshfl [vmem:[#allocation1 + $0x10] sm:$0xff pattern:$0x75316420] %v41
    %s208 = scalar_lea.vmem [#allocation1], 17
    %v209 = vld [vmem:[%s208] ss:$2 sm:$0xff]
    %210 = vst.sshfl [vmem:[#allocation1 + $0x20] sm:$0xff pattern:$0x75316420] %v43
    %s211 = scalar_lea.vmem [#allocation1], 33
    %v212 = vld [vmem:[%s211] ss:$2 sm:$0xff]
    %213 = vst.sshfl [vmem:[#allocation1 + $0x30] sm:$0xff pattern:$0x75316420] %v45
    %s214 = scalar_lea.vmem [#allocation1], 49
    %v215 = vld [vmem:[%s214] ss:$2 sm:$0xff]
    %v216 = vrot.slane %v206, 3
    %v217 = vrot.slane %v209, 2
    %v218 = vsel %vm60, %v217, %v216
    %v219 = vsel %vm62, %v217, %v218
    %v220 = vrot.slane %v212, 1
    %v221 = vsel %vm65, %v220, %v219
    %v222 = vsel %vm67, %v220, %v221
    %v223 = vsel %vm70, %v215, %v222
    %v224 = vsel %vm72, %v215, %v223
    %225 = vrot.lane.b32.xlu0 %v224, 17
    %v226 = vpop.permute.xlu0 %225
    %vm228 = vcmask 265352
    %229 = vst.msk [vmem:[#allocation2 + $0x4] sm:$0xf] %vm228, %v226
    %v234 = vrot.slane %v42, 7
    %v235 = vsel %vm60, %v234, %v40
    %v236 = vsel %vm62, %v234, %v235
    %v237 = vrot.slane %v44, 6
    %v238 = vsel %vm65, %v237, %v236
    %v239 = vsel %vm67, %v237, %v238
    %v240 = vrot.slane %v46, 5
    %v241 = vsel %vm70, %v240, %v239
    %v242 = vsel %vm72, %v240, %v241
    %243 = vrot.lane.b32.xlu0 %v242, 35
    %v244 = vpop.permute.xlu0 %243
    %vm246 = vcmask 412952
    %247 = vst.msk [vmem:[#allocation2 + $0x4] sm:$0xf] %vm246, %v244
    %v248 = vrot.slane %v40, 1
    %v249 = vsel %vm60, %v42, %v248
    %v250 = vsel %vm62, %v42, %v249
    %v251 = vrot.slane %v44, 7
    %v252 = vsel %vm65, %v251, %v250
    %v253 = vsel %vm67, %v251, %v252
    %v254 = vrot.slane %v46, 6
    %v255 = vsel %vm70, %v254, %v253
    %v256 = vsel %vm72, %v254, %v255
    %257 = vrot.lane.b32.xlu0 %v256, 53
    %v258 = vpop.permute.xlu0 %257
    %vm260 = vcmask 560552
    %261 = vst.msk [vmem:[#allocation2 + $0x4] sm:$0xf] %vm260, %v258
    %v262 = vrot.slane %v40, 2
    %v263 = vrot.slane %v42, 1
    %v264 = vsel %vm60, %v263, %v262
    %v265 = vsel %vm62, %v263, %v264
    %v266 = vsel %vm65, %v44, %v265
    %v267 = vsel %vm67, %v44, %v266
    %v268 = vrot.slane %v46, 7
    %v269 = vsel %vm70, %v268, %v267
    %v270 = vsel %vm72, %v268, %v269
    %271 = vrot.lane.b32.xlu0 %v270, 71
    %v272 = vpop.permute.xlu0 %271
    %vm274 = vcmask 708152
    %275 = vst.msk [vmem:[#allocation2 + $0x4] sm:$0xf] %vm274, %v272
    %v276 = vrot.slane %v40, 3
    %v277 = vrot.slane %v42, 2
    %v278 = vsel %vm60, %v277, %v276
    %v279 = vsel %vm62, %v277, %v278
    %v280 = vrot.slane %v44, 1
    %v281 = vsel %vm65, %v280, %v279
    %v282 = vsel %vm67, %v280, %v281
    %v283 = vsel %vm70, %v46, %v282
    %v284 = vsel %vm72, %v46, %v283
    %285 = vrot.lane.b32.xlu0 %v284, 89
    %v286 = vpop.permute.xlu0 %285
    %vm288 = vcmask 855752
    %289 = vst.msk [vmem:[#allocation2 + $0x4] sm:$0xf] %vm288, %v286
    %290 = vst.sshfl [vmem:[#allocation1] sm:$0xff pattern:$0x75316420] %v40
    %s291 = scalar_lea.vmem [#allocation1], 1
    %v292 = vld [vmem:[%s291] ss:$2 sm:$0xff]
    %293 = vst.sshfl [vmem:[#allocation1 + $0x10] sm:$0xff pattern:$0x75316420] %v42
    %s294 = scalar_lea.vmem [#allocation1], 17
    %v295 = vld [vmem:[%s294] ss:$2 sm:$0xff]
    %296 = vst.sshfl [vmem:[#allocation1 + $0x20] sm:$0xff pattern:$0x75316420] %v44
    %s297 = scalar_lea.vmem [#allocation1], 33
    %v298 = vld [vmem:[%s297] ss:$2 sm:$0xff]
    %299 = vst.sshfl [vmem:[#allocation1 + $0x30] sm:$0xff pattern:$0x75316420] %v46
    %s300 = scalar_lea.vmem [#allocation1], 49
    %v301 = vld [vmem:[%s300] ss:$2 sm:$0xff]
    %v302 = vrot.slane %v295, 7
    %v303 = vsel %vm60, %v302, %v292
    %v304 = vsel %vm62, %v302, %v303
    %v305 = vrot.slane %v298, 6
    %v306 = vsel %vm65, %v305, %v304
    %v307 = vsel %vm67, %v305, %v306
    %v308 = vrot.slane %v301, 5
    %v309 = vsel %vm70, %v308, %v307
    %v310 = vsel %vm72, %v308, %v309
    %311 = vrot.lane.b32.xlu0 %v310, 107
    %v312 = vpop.permute.xlu0 %311
    %vm314 = vcmask 1003352
    %315 = vst.msk [vmem:[#allocation2 + $0x4] sm:$0xf] %vm314, %v312
    %316 = vst.sshfl [vmem:[#allocation1] sm:$0xff pattern:$0x75316420] %v40
    %s317 = scalar_lea.vmem [#allocation1], 1
    %v318 = vld [vmem:[%s317] ss:$2 sm:$0xff]
    %319 = vst.sshfl [vmem:[#allocation1 + $0x10] sm:$0xff pattern:$0x75316420] %v42
    %s320 = scalar_lea.vmem [#allocation1], 17
    %v321 = vld [vmem:[%s320] ss:$2 sm:$0xff]
    %322 = vst.sshfl [vmem:[#allocation1 + $0x20] sm:$0xff pattern:$0x75316420] %v44
    %s323 = scalar_lea.vmem [#allocation1], 33
    %v324 = vld [vmem:[%s323] ss:$2 sm:$0xff]
    %325 = vst.sshfl [vmem:[#allocation1 + $0x30] sm:$0xff pattern:$0x75316420] %v46
    %s326 = scalar_lea.vmem [#allocation1], 49
    %v327 = vld [vmem:[%s326] ss:$2 sm:$0xff]
    %v328 = vrot.slane %v318, 1
    %v329 = vsel %vm60, %v321, %v328
    %v330 = vsel %vm62, %v321, %v329
    %v331 = vrot.slane %v324, 7
    %v332 = vsel %vm65, %v331, %v330
    %v333 = vsel %vm67, %v331, %v332
    %v334 = vrot.slane %v327, 6
    %v335 = vsel %vm70, %v334, %v333
    %v336 = vsel %vm72, %v334, %v335
    %337 = vrot.lane.b32.xlu0 %v336, 125
    %v338 = vpop.permute.xlu0 %337
    %v339 = vrot.slane %v338, 4
    %vm340 = vcmask 1022976
    %v341 = vsel %vm340, %v339, %v338
    %vm343 = vcmask 1044456
    %vm344 = vcmask 105476
    %vm345 = vmor %vm344, %vm343
    %346 = vst.msk [vmem:[#allocation2 + $0x4] sm:$0xff] %vm345, %v341
    %347 = vst.sshfl [vmem:[#allocation1] sm:$0xff pattern:$0x75316420] %v40
    %s348 = scalar_lea.vmem [#allocation1], 1
    %v349 = vld [vmem:[%s348] ss:$2 sm:$0xff]
    %350 = vst.sshfl [vmem:[#allocation1 + $0x10] sm:$0xff pattern:$0x75316420] %v42
    %s351 = scalar_lea.vmem [#allocation1], 17
    %v352 = vld [vmem:[%s351] ss:$2 sm:$0xff]
    %353 = vst.sshfl [vmem:[#allocation1 + $0x20] sm:$0xff pattern:$0x75316420] %v44
    %s354 = scalar_lea.vmem [#allocation1], 33
    %v355 = vld [vmem:[%s354] ss:$2 sm:$0xff]
    %356 = vst.sshfl [vmem:[#allocation1 + $0x30] sm:$0xff pattern:$0x75316420] %v46
    %s357 = scalar_lea.vmem [#allocation1], 49
    %v358 = vld [vmem:[%s357] ss:$2 sm:$0xff]
    %v359 = vrot.slane %v349, 2
    %v360 = vrot.slane %v352, 1
    %v361 = vsel %vm60, %v360, %v359
    %v362 = vsel %vm62, %v360, %v361
    %v363 = vsel %vm65, %v355, %v362
    %v364 = vsel %vm67, %v355, %v363
    %v365 = vrot.slane %v358, 7
    %v366 = vsel %vm70, %v365, %v364
    %v367 = vsel %vm72, %v365, %v366
    %368 = vrot.lane.b32.xlu0 %v367, 15
    %v369 = vpop.permute.xlu0 %368
    %vm371 = vcmask 248952
    %372 = vst.msk [vmem:[#allocation2 + $0x8] sm:$0xf] %vm371, %v369
    %373 = vst.sshfl [vmem:[#allocation1] sm:$0xff pattern:$0x75316420] %v40
    %s374 = scalar_lea.vmem [#allocation1], 1
    %v375 = vld [vmem:[%s374] ss:$2 sm:$0xff]
    %376 = vst.sshfl [vmem:[#allocation1 + $0x10] sm:$0xff pattern:$0x75316420] %v42
    %s377 = scalar_lea.vmem [#allocation1], 17
    %v378 = vld [vmem:[%s377] ss:$2 sm:$0xff]
    %379 = vst.sshfl [vmem:[#allocation1 + $0x20] sm:$0xff pattern:$0x75316420] %v44
    %s380 = scalar_lea.vmem [#allocation1], 33
    %v381 = vld [vmem:[%s380] ss:$2 sm:$0xff]
    %382 = vst.sshfl [vmem:[#allocation1 + $0x30] sm:$0xff pattern:$0x75316420] %v46
    %s383 = scalar_lea.vmem [#allocation1], 49
    %v384 = vld [vmem:[%s383] ss:$2 sm:$0xff]
    %v385 = vrot.slane %v375, 3
    %v386 = vrot.slane %v378, 2
    %v387 = vsel %vm60, %v386, %v385
    %v388 = vsel %vm62, %v386, %v387
    %v389 = vrot.slane %v381, 1
    %v390 = vsel %vm65, %v389, %v388
    %v391 = vsel %vm67, %v389, %v390
    %v392 = vsel %vm70, %v384, %v391
    %v393 = vsel %vm72, %v384, %v392
    %394 = vrot.lane.b32.xlu0 %v393, 33
    %v395 = vpop.permute.xlu0 %394
    %vm397 = vcmask 396552
    %398 = vst.msk [vmem:[#allocation2 + $0x8] sm:$0xf] %vm397, %v395
    %v403 = vrot.slane %v49, 7
    %v404 = vsel %vm60, %v403, %v47
    %v405 = vsel %vm62, %v403, %v404
    %v406 = vrot.slane %v51, 6
    %v407 = vsel %vm65, %v406, %v405
    %v408 = vsel %vm67, %v406, %v407
    %v409 = vrot.slane %v53, 5
    %v410 = vsel %vm70, %v409, %v408
    %v411 = vsel %vm72, %v409, %v410
    %412 = vrot.lane.b32.xlu0 %v411, 19
    %v413 = vpop.permute.xlu0 %412
    %s415 = scalar_lea.vmem [#allocation2], 16
    %416 = vst.msk [vmem:[%s415] sm:$0xf] %vm77, %v413
    %v417 = vrot.slane %v47, 1
    %v418 = vsel %vm60, %v49, %v417
    %v419 = vsel %vm62, %v49, %v418
    %v420 = vrot.slane %v51, 7
    %v421 = vsel %vm65, %v420, %v419
    %v422 = vsel %vm67, %v420, %v421
    %v423 = vrot.slane %v53, 6
    %v424 = vsel %vm70, %v423, %v422
    %v425 = vsel %vm72, %v423, %v424
    %426 = vrot.lane.b32.xlu0 %v425, 37
    %v427 = vpop.permute.xlu0 %426
    %429 = vst.msk [vmem:[%s415] sm:$0xf] %vm91, %v427
    %v430 = vrot.slane %v47, 2
    %v431 = vrot.slane %v49, 1
    %v432 = vsel %vm60, %v431, %v430
    %v433 = vsel %vm62, %v431, %v432
    %v434 = vsel %vm65, %v51, %v433
    %v435 = vsel %vm67, %v51, %v434
    %v436 = vrot.slane %v53, 7
    %v437 = vsel %vm70, %v436, %v435
    %v438 = vsel %vm72, %v436, %v437
    %439 = vrot.lane.b32.xlu0 %v438, 55
    %v440 = vpop.permute.xlu0 %439
    %442 = vst.msk [vmem:[%s415] sm:$0xf] %vm105, %v440
    %v443 = vrot.slane %v47, 3
    %v444 = vrot.slane %v49, 2
    %v445 = vsel %vm60, %v444, %v443
    %v446 = vsel %vm62, %v444, %v445
    %v447 = vrot.slane %v51, 1
    %v448 = vsel %vm65, %v447, %v446
    %v449 = vsel %vm67, %v447, %v448
    %v450 = vsel %vm70, %v53, %v449
    %v451 = vsel %vm72, %v53, %v450
    %452 = vrot.lane.b32.xlu0 %v451, 73
    %v453 = vpop.permute.xlu0 %452
    %455 = vst.msk [vmem:[%s415] sm:$0xf] %vm119, %v453
    %456 = vst.sshfl [vmem:[#allocation1] sm:$0xff pattern:$0x75316420] %v47
    %s457 = scalar_lea.vmem [#allocation1], 1
    %v458 = vld [vmem:[%s457] ss:$2 sm:$0xff]
    %459 = vst.sshfl [vmem:[#allocation1 + $0x10] sm:$0xff pattern:$0x75316420] %v49
    %s460 = scalar_lea.vmem [#allocation1], 17
    %v461 = vld [vmem:[%s460] ss:$2 sm:$0xff]
    %462 = vst.sshfl [vmem:[#allocation1 + $0x20] sm:$0xff pattern:$0x75316420] %v51
    %s463 = scalar_lea.vmem [#allocation1], 33
    %v464 = vld [vmem:[%s463] ss:$2 sm:$0xff]
    %465 = vst.sshfl [vmem:[#allocation1 + $0x30] sm:$0xff pattern:$0x75316420] %v53
    %s466 = scalar_lea.vmem [#allocation1], 49
    %v467 = vld [vmem:[%s466] ss:$2 sm:$0xff]
    %v468 = vrot.slane %v461, 7
    %v469 = vsel %vm60, %v468, %v458
    %v470 = vsel %vm62, %v468, %v469
    %v471 = vrot.slane %v464, 6
    %v472 = vsel %vm65, %v471, %v470
    %v473 = vsel %vm67, %v471, %v472
    %v474 = vrot.slane %v467, 5
    %v475 = vsel %vm70, %v474, %v473
    %v476 = vsel %vm72, %v474, %v475
    %477 = vrot.lane.b32.xlu0 %v476, 91
    %v478 = vpop.permute.xlu0 %477
    %480 = vst.msk [vmem:[%s415] sm:$0xf] %vm145, %v478
    %481 = vst.sshfl [vmem:[#allocation1] sm:$0xff pattern:$0x75316420] %v47
    %s482 = scalar_lea.vmem [#allocation1], 1
    %v483 = vld [vmem:[%s482] ss:$2 sm:$0xff]
    %484 = vst.sshfl [vmem:[#allocation1 + $0x10] sm:$0xff pattern:$0x75316420] %v49
    %s485 = scalar_lea.vmem [#allocation1], 17
    %v486 = vld [vmem:[%s485] ss:$2 sm:$0xff]
    %487 = vst.sshfl [vmem:[#allocation1 + $0x20] sm:$0xff pattern:$0x75316420] %v51
    %s488 = scalar_lea.vmem [#allocation1], 33
    %v489 = vld [vmem:[%s488] ss:$2 sm:$0xff]
    %490 = vst.sshfl [vmem:[#allocation1 + $0x30] sm:$0xff pattern:$0x75316420] %v53
    %s491 = scalar_lea.vmem [#allocation1], 49
    %v492 = vld [vmem:[%s491] ss:$2 sm:$0xff]
    %v493 = vrot.slane %v483, 1
    %v494 = vsel %vm60, %v486, %v493
    %v495 = vsel %vm62, %v486, %v494
    %v496 = vrot.slane %v489, 7
    %v497 = vsel %vm65, %v496, %v495
    %v498 = vsel %vm67, %v496, %v497
    %v499 = vrot.slane %v492, 6
    %v500 = vsel %vm70, %v499, %v498
    %v501 = vsel %vm72, %v499, %v500
    %502 = vrot.lane.b32.xlu0 %v501, 109
    %v503 = vpop.permute.xlu0 %502
    %505 = vst.msk [vmem:[%s415] sm:$0xf] %vm171, %v503
    %506 = vst.sshfl [vmem:[#allocation1] sm:$0xff pattern:$0x75316420] %v47
    %s507 = scalar_lea.vmem [#allocation1], 1
    %v508 = vld [vmem:[%s507] ss:$2 sm:$0xff]
    %509 = vst.sshfl [vmem:[#allocation1 + $0x10] sm:$0xff pattern:$0x75316420] %v49
    %s510 = scalar_lea.vmem [#allocation1], 17
    %v511 = vld [vmem:[%s510] ss:$2 sm:$0xff]
    %512 = vst.sshfl [vmem:[#allocation1 + $0x20] sm:$0xff pattern:$0x75316420] %v51
    %s513 = scalar_lea.vmem [#allocation1], 33
    %v514 = vld [vmem:[%s513] ss:$2 sm:$0xff]
    %515 = vst.sshfl [vmem:[#allocation1 + $0x30] sm:$0xff pattern:$0x75316420] %v53
    %s516 = scalar_lea.vmem [#allocation1], 49
    %v517 = vld [vmem:[%s516] ss:$2 sm:$0xff]
    %v518 = vrot.slane %v508, 2
    %v519 = vrot.slane %v511, 1
    %v520 = vsel %vm60, %v519, %v518
    %v521 = vsel %vm62, %v519, %v520
    %v522 = vsel %vm65, %v514, %v521
    %v523 = vsel %vm67, %v514, %v522
    %v524 = vrot.slane %v517, 7
    %v525 = vsel %vm70, %v524, %v523
    %v526 = vsel %vm72, %v524, %v525
    %527 = vrot.lane.b32.xlu0 %v526, 127
    %v528 = vpop.permute.xlu0 %527
    %v529 = vrot.slane %v528, 4
    %v530 = vsel %vm197, %v529, %v528
    %532 = vst.msk [vmem:[%s415] sm:$0xff] %vm202, %v530
    %533 = vst.sshfl [vmem:[#allocation1] sm:$0xff pattern:$0x75316420] %v47
    %s534 = scalar_lea.vmem [#allocation1], 1
    %v535 = vld [vmem:[%s534] ss:$2 sm:$0xff]
    %536 = vst.sshfl [vmem:[#allocation1 + $0x10] sm:$0xff pattern:$0x75316420] %v49
    %s537 = scalar_lea.vmem [#allocation1], 17
    %v538 = vld [vmem:[%s537] ss:$2 sm:$0xff]
    %539 = vst.sshfl [vmem:[#allocation1 + $0x20] sm:$0xff pattern:$0x75316420] %v51
    %s540 = scalar_lea.vmem [#allocation1], 33
    %v541 = vld [vmem:[%s540] ss:$2 sm:$0xff]
    %542 = vst.sshfl [vmem:[#allocation1 + $0x30] sm:$0xff pattern:$0x75316420] %v53
    %s543 = scalar_lea.vmem [#allocation1], 49
    %v544 = vld [vmem:[%s543] ss:$2 sm:$0xff]
    %v545 = vrot.slane %v535, 3
    %v546 = vrot.slane %v538, 2
    %v547 = vsel %vm60, %v546, %v545
    %v548 = vsel %vm62, %v546, %v547
    %v549 = vrot.slane %v541, 1
    %v550 = vsel %vm65, %v549, %v548
    %v551 = vsel %vm67, %v549, %v550
    %v552 = vsel %vm70, %v544, %v551
    %v553 = vsel %vm72, %v544, %v552
    %554 = vrot.lane.b32.xlu0 %v553, 17
    %v555 = vpop.permute.xlu0 %554
    %557 = vst.msk [vmem:[%s415 + $0x4] sm:$0xf] %vm228, %v555
    %v562 = vrot.slane %v50, 7
    %v563 = vsel %vm60, %v562, %v48
    %v564 = vsel %vm62, %v562, %v563
    %v565 = vrot.slane %v52, 6
    %v566 = vsel %vm65, %v565, %v564
    %v567 = vsel %vm67, %v565, %v566
    %v568 = vrot.slane %v54, 5
    %v569 = vsel %vm70, %v568, %v567
    %v570 = vsel %vm72, %v568, %v569
    %571 = vrot.lane.b32.xlu0 %v570, 35
    %v572 = vpop.permute.xlu0 %571
    %574 = vst.msk [vmem:[%s415 + $0x4] sm:$0xf] %vm246, %v572
    %v575 = vrot.slane %v48, 1
    %v576 = vsel %vm60, %v50, %v575
    %v577 = vsel %vm62, %v50, %v576
    %v578 = vrot.slane %v52, 7
    %v579 = vsel %vm65, %v578, %v577
    %v580 = vsel %vm67, %v578, %v579
    %v581 = vrot.slane %v54, 6
    %v582 = vsel %vm70, %v581, %v580
    %v583 = vsel %vm72, %v581, %v582
    %584 = vrot.lane.b32.xlu0 %v583, 53
    %v585 = vpop.permute.xlu0 %584
    %587 = vst.msk [vmem:[%s415 + $0x4] sm:$0xf] %vm260, %v585
    %v588 = vrot.slane %v48, 2
    %v589 = vrot.slane %v50, 1
    %v590 = vsel %vm60, %v589, %v588
    %v591 = vsel %vm62, %v589, %v590
    %v592 = vsel %vm65, %v52, %v591
    %v593 = vsel %vm67, %v52, %v592
    %v594 = vrot.slane %v54, 7
    %v595 = vsel %vm70, %v594, %v593
    %v596 = vsel %vm72, %v594, %v595
    %597 = vrot.lane.b32.xlu0 %v596, 71
    %v598 = vpop.permute.xlu0 %597
    %600 = vst.msk [vmem:[%s415 + $0x4] sm:$0xf] %vm274, %v598
    %v601 = vrot.slane %v48, 3
    %v602 = vrot.slane %v50, 2
    %v603 = vsel %vm60, %v602, %v601
    %v604 = vsel %vm62, %v602, %v603
    %v605 = vrot.slane %v52, 1
    %v606 = vsel %vm65, %v605, %v604
    %v607 = vsel %vm67, %v605, %v606
    %v608 = vsel %vm70, %v54, %v607
    %v609 = vsel %vm72, %v54, %v608
    %610 = vrot.lane.b32.xlu0 %v609, 89
    %v611 = vpop.permute.xlu0 %610
    %613 = vst.msk [vmem:[%s415 + $0x4] sm:$0xf] %vm288, %v611
    %614 = vst.sshfl [vmem:[#allocation1] sm:$0xff pattern:$0x75316420] %v48
    %s615 = scalar_lea.vmem [#allocation1], 1
    %v616 = vld [vmem:[%s615] ss:$2 sm:$0xff]
    %617 = vst.sshfl [vmem:[#allocation1 + $0x10] sm:$0xff pattern:$0x75316420] %v50
    %s618 = scalar_lea.vmem [#allocation1], 17
    %v619 = vld [vmem:[%s618] ss:$2 sm:$0xff]
    %620 = vst.sshfl [vmem:[#allocation1 + $0x20] sm:$0xff pattern:$0x75316420] %v52
    %s621 = scalar_lea.vmem [#allocation1], 33
    %v622 = vld [vmem:[%s621] ss:$2 sm:$0xff]
    %623 = vst.sshfl [vmem:[#allocation1 + $0x30] sm:$0xff pattern:$0x75316420] %v54
    %s624 = scalar_lea.vmem [#allocation1], 49
    %v625 = vld [vmem:[%s624] ss:$2 sm:$0xff]
    %v626 = vrot.slane %v619, 7
    %v627 = vsel %vm60, %v626, %v616
    %v628 = vsel %vm62, %v626, %v627
    %v629 = vrot.slane %v622, 6
    %v630 = vsel %vm65, %v629, %v628
    %v631 = vsel %vm67, %v629, %v630
    %v632 = vrot.slane %v625, 5
    %v633 = vsel %vm70, %v632, %v631
    %v634 = vsel %vm72, %v632, %v633
    %635 = vrot.lane.b32.xlu0 %v634, 107
    %v636 = vpop.permute.xlu0 %635
    %638 = vst.msk [vmem:[%s415 + $0x4] sm:$0xf] %vm314, %v636
    %639 = vst.sshfl [vmem:[#allocation1] sm:$0xff pattern:$0x75316420] %v48
    %s640 = scalar_lea.vmem [#allocation1], 1
    %v641 = vld [vmem:[%s640] ss:$2 sm:$0xff]
    %642 = vst.sshfl [vmem:[#allocation1 + $0x10] sm:$0xff pattern:$0x75316420] %v50
    %s643 = scalar_lea.vmem [#allocation1], 17
    %v644 = vld [vmem:[%s643] ss:$2 sm:$0xff]
    %645 = vst.sshfl [vmem:[#allocation1 + $0x20] sm:$0xff pattern:$0x75316420] %v52
    %s646 = scalar_lea.vmem [#allocation1], 33
    %v647 = vld [vmem:[%s646] ss:$2 sm:$0xff]
    %648 = vst.sshfl [vmem:[#allocation1 + $0x30] sm:$0xff pattern:$0x75316420] %v54
    %s649 = scalar_lea.vmem [#allocation1], 49
    %v650 = vld [vmem:[%s649] ss:$2 sm:$0xff]
    %v651 = vrot.slane %v641, 1
    %v652 = vsel %vm60, %v644, %v651
    %v653 = vsel %vm62, %v644, %v652
    %v654 = vrot.slane %v647, 7
    %v655 = vsel %vm65, %v654, %v653
    %v656 = vsel %vm67, %v654, %v655
    %v657 = vrot.slane %v650, 6
    %v658 = vsel %vm70, %v657, %v656
    %v659 = vsel %vm72, %v657, %v658
    %660 = vrot.lane.b32.xlu0 %v659, 125
    %v661 = vpop.permute.xlu0 %660
    %v662 = vrot.slane %v661, 4
    %v663 = vsel %vm340, %v662, %v661
    %665 = vst.msk [vmem:[%s415 + $0x4] sm:$0xff] %vm345, %v663
    %666 = vst.sshfl [vmem:[#allocation1] sm:$0xff pattern:$0x75316420] %v48
    %s667 = scalar_lea.vmem [#allocation1], 1
    %v668 = vld [vmem:[%s667] ss:$2 sm:$0xff]
    %669 = vst.sshfl [vmem:[#allocation1 + $0x10] sm:$0xff pattern:$0x75316420] %v50
    %s670 = scalar_lea.vmem [#allocation1], 17
    %v671 = vld [vmem:[%s670] ss:$2 sm:$0xff]
    %672 = vst.sshfl [vmem:[#allocation1 + $0x20] sm:$0xff pattern:$0x75316420] %v52
    %s673 = scalar_lea.vmem [#allocation1], 33
    %v674 = vld [vmem:[%s673] ss:$2 sm:$0xff]
    %675 = vst.sshfl [vmem:[#allocation1 + $0x30] sm:$0xff pattern:$0x75316420] %v54
    %s676 = scalar_lea.vmem [#allocation1], 49
    %v677 = vld [vmem:[%s676] ss:$2 sm:$0xff]
    %v678 = vrot.slane %v668, 2
    %v679 = vrot.slane %v671, 1
    %v680 = vsel %vm60, %v679, %v678
    %v681 = vsel %vm62, %v679, %v680
    %v682 = vsel %vm65, %v674, %v681
    %v683 = vsel %vm67, %v674, %v682
    %v684 = vrot.slane %v677, 7
    %v685 = vsel %vm70, %v684, %v683
    %v686 = vsel %vm72, %v684, %v685
    %687 = vrot.lane.b32.xlu0 %v686, 15
    %v688 = vpop.permute.xlu0 %687
    %690 = vst.msk [vmem:[%s415 + $0x8] sm:$0xf] %vm371, %v688
    %691 = vst.sshfl [vmem:[#allocation1] sm:$0xff pattern:$0x75316420] %v48
    %s692 = scalar_lea.vmem [#allocation1], 1
    %v693 = vld [vmem:[%s692] ss:$2 sm:$0xff]
    %694 = vst.sshfl [vmem:[#allocation1 + $0x10] sm:$0xff pattern:$0x75316420] %v50
    %s695 = scalar_lea.vmem [#allocation1], 17
    %v696 = vld [vmem:[%s695] ss:$2 sm:$0xff]
    %697 = vst.sshfl [vmem:[#allocation1 + $0x20] sm:$0xff pattern:$0x75316420] %v52
    %s698 = scalar_lea.vmem [#allocation1], 33
    %v699 = vld [vmem:[%s698] ss:$2 sm:$0xff]
    %700 = vst.sshfl [vmem:[#allocation1 + $0x30] sm:$0xff pattern:$0x75316420] %v54
    %s701 = scalar_lea.vmem [#allocation1], 49
    %v702 = vld [vmem:[%s701] ss:$2 sm:$0xff]
    %v703 = vrot.slane %v693, 3
    %v704 = vrot.slane %v696, 2
    %v705 = vsel %vm60, %v704, %v703
    %v706 = vsel %vm62, %v704, %v705
    %v707 = vrot.slane %v699, 1
    %v708 = vsel %vm65, %v707, %v706
    %v709 = vsel %vm67, %v707, %v708
    %v710 = vsel %vm70, %v702, %v709
    %v711 = vsel %vm72, %v702, %v710
    %712 = vrot.lane.b32.xlu0 %v711, 33
    %v713 = vpop.permute.xlu0 %712
    %715 = vst.msk [vmem:[%s415 + $0x8] sm:$0xf] %vm397, %v713
    %v716 = vld [vmem:[#allocation2] sm:$0xff]
    %v717 = vld [vmem:[#allocation2 + $0x8] sm:$0xf]
    %v718 = vld [vmem:[#allocation2 + $0x8] sm:$0xff]
    %721 = vst [vmem:[#allocation1] ss:$2 sm:$0xff] %v716
    %s722 = scalar_lea.vmem [#allocation1], 16
    %723 = vst [vmem:[%s722] ss:$2 sm:$0xff] %v717
    %v724 = vld.sshfl [vmem:[#allocation1] sm:$0xff pattern:$0x75316420]
    %v725 = vld.sshfl [vmem:[#allocation1 + $0x8] sm:$0xff pattern:$0x75316420]
    %v726 = vld.sshfl [vmem:[#allocation1 + $0x10] sm:$0xff pattern:$0x75316420]
    %s731 = scalar_lea.vmem [#allocation1], 1
    %732 = vst [vmem:[%s731] ss:$2 sm:$0xff] %v716
    %s733 = scalar_lea.vmem [#allocation1], 17
    %734 = vst [vmem:[%s733] ss:$2 sm:$0xff] %v718
    %v735 = vld.sshfl [vmem:[#allocation1] sm:$0xff pattern:$0x75316420]
    %v736 = vld.sshfl [vmem:[#allocation1 + $0x8] sm:$0xff pattern:$0x75316420]
    %v737 = vld.sshfl [vmem:[#allocation1 + $0x10] sm:$0xff pattern:$0x75316420]
    %v738 = vld.sshfl [vmem:[#allocation1 + $0x18] sm:$0xff pattern:$0x75316420]
    %739 = vrot.lane.b32.xlu0 %v735, 127
    %v740 = vpop.permute.xlu0 %739
    %741 = vrot.lane.b32.xlu0 %v736, 127
    %v742 = vpop.permute.xlu0 %741
    %743 = vrot.lane.b32.xlu0 %v737, 127
    %v744 = vpop.permute.xlu0 %743
    %745 = vrot.lane.b32.xlu0 %v738, 127
    %v746 = vpop.permute.xlu0 %745
    %v747 = vsel %vm197, %v740, %v742
    %v748 = vsel %vm197, %v742, %v744
    %v749 = vsel %vm197, %v744, %v746
    %753 = vst [vmem:[#allocation1] ss:$2 sm:$0xff] %v716
    %s754 = scalar_lea.vmem [#allocation1], 16
    %755 = vst [vmem:[%s754] ss:$2 sm:$0xff] %v718
    %v756 = vld.sshfl [vmem:[#allocation1] sm:$0xff pattern:$0x75316420]
    %v757 = vld.sshfl [vmem:[#allocation1 + $0x8] sm:$0xff pattern:$0x75316420]
    %v758 = vld.sshfl [vmem:[#allocation1 + $0x10] sm:$0xff pattern:$0x75316420]
    %v759 = vld.sshfl [vmem:[#allocation1 + $0x18] sm:$0xff pattern:$0x75316420]
    %760 = vrot.lane.b32.xlu0 %v756, 126
    %v761 = vpop.permute.xlu0 %760
    %762 = vrot.lane.b32.xlu0 %v757, 126
    %v763 = vpop.permute.xlu0 %762
    %764 = vrot.lane.b32.xlu0 %v758, 126
    %v765 = vpop.permute.xlu0 %764
    %766 = vrot.lane.b32.xlu0 %v759, 126
    %v767 = vpop.permute.xlu0 %766
    %vm768 = vcmask 1031168
    %v769 = vsel %vm768, %v761, %v763
    %v770 = vsel %vm768, %v763, %v765
    %v771 = vsel %vm768, %v765, %v767
    %s775 = scalar_lea.vmem [#allocation1], 1
    %776 = vst [vmem:[%s775] ss:$2 sm:$0xff] %v716
    %s777 = scalar_lea.vmem [#allocation1], 17
    %778 = vst [vmem:[%s777] ss:$2 sm:$0xff] %v718
    %v779 = vld.sshfl [vmem:[#allocation1] sm:$0xff pattern:$0x75316420]
    %v780 = vld.sshfl [vmem:[#allocation1 + $0x8] sm:$0xff pattern:$0x75316420]
    %v781 = vld.sshfl [vmem:[#allocation1 + $0x10] sm:$0xff pattern:$0x75316420]
    %v782 = vld.sshfl [vmem:[#allocation1 + $0x18] sm:$0xff pattern:$0x75316420]
    %783 = vrot.lane.b32.xlu0 %v779, 110
    %v784 = vpop.permute.xlu0 %783
    %785 = vrot.lane.b32.xlu0 %v780, 110
    %v786 = vpop.permute.xlu0 %785
    %787 = vrot.lane.b32.xlu0 %v781, 110
    %v788 = vpop.permute.xlu0 %787
    %789 = vrot.lane.b32.xlu0 %v782, 110
    %v790 = vpop.permute.xlu0 %789
    %vm791 = vcmask 900096
    %v792 = vsel %vm791, %v784, %v786
    %v793 = vsel %vm791, %v786, %v788
    %v794 = vsel %vm791, %v788, %v790
    %798 = vst [vmem:[#allocation1] ss:$2 sm:$0xff] %v716
    %s799 = scalar_lea.vmem [#allocation1], 16
    %800 = vst [vmem:[%s799] ss:$2 sm:$0xff] %v718
    %v801 = vld.sshfl [vmem:[#allocation1] sm:$0xff pattern:$0x75316420]
    %v802 = vld.sshfl [vmem:[#allocation1 + $0x8] sm:$0xff pattern:$0x75316420]
    %v803 = vld.sshfl [vmem:[#allocation1 + $0x10] sm:$0xff pattern:$0x75316420]
    %v804 = vld.sshfl [vmem:[#allocation1 + $0x18] sm:$0xff pattern:$0x75316420]
    %805 = vrot.lane.b32.xlu0 %v801, 109
    %v806 = vpop.permute.xlu0 %805
    %807 = vrot.lane.b32.xlu0 %v802, 109
    %v808 = vpop.permute.xlu0 %807
    %809 = vrot.lane.b32.xlu0 %v803, 109
    %v810 = vpop.permute.xlu0 %809
    %811 = vrot.lane.b32.xlu0 %v804, 109
    %v812 = vpop.permute.xlu0 %811
    %vm813 = vcmask 891904
    %v814 = vsel %vm813, %v806, %v808
    %v815 = vsel %vm813, %v808, %v810
    %v816 = vsel %vm813, %v810, %v812
    %s820 = scalar_lea.vmem [#allocation1], 1
    %821 = vst [vmem:[%s820] ss:$2 sm:$0xff] %v716
    %s822 = scalar_lea.vmem [#allocation1], 17
    %823 = vst [vmem:[%s822] ss:$2 sm:$0xff] %v718
    %v824 = vld.sshfl [vmem:[#allocation1] sm:$0xff pattern:$0x75316420]
    %v825 = vld.sshfl [vmem:[#allocation1 + $0x8] sm:$0xff pattern:$0x75316420]
    %v826 = vld.sshfl [vmem:[#allocation1 + $0x10] sm:$0xff pattern:$0x75316420]
    %v827 = vld.sshfl [vmem:[#allocation1 + $0x18] sm:$0xff pattern:$0x75316420]
    %828 = vrot.lane.b32.xlu0 %v824, 108
    %v829 = vpop.permute.xlu0 %828
    %830 = vrot.lane.b32.xlu0 %v825, 108
    %v831 = vpop.permute.xlu0 %830
    %832 = vrot.lane.b32.xlu0 %v826, 108
    %v833 = vpop.permute.xlu0 %832
    %834 = vrot.lane.b32.xlu0 %v827, 108
    %v835 = vpop.permute.xlu0 %834
    %vm836 = vcmask 883712
    %v837 = vsel %vm836, %v829, %v831
    %v838 = vsel %vm836, %v831, %v833
    %v839 = vsel %vm836, %v833, %v835
    %843 = vst [vmem:[#allocation1] ss:$2 sm:$0xff] %v716
    %s844 = scalar_lea.vmem [#allocation1], 16
    %845 = vst [vmem:[%s844] ss:$2 sm:$0xff] %v718
    %v846 = vld.sshfl [vmem:[#allocation1] sm:$0xff pattern:$0x75316420]
    %v847 = vld.sshfl [vmem:[#allocation1 + $0x8] sm:$0xff pattern:$0x75316420]
    %v848 = vld.sshfl [vmem:[#allocation1 + $0x10] sm:$0xff pattern:$0x75316420]
    %v849 = vld.sshfl [vmem:[#allocation1 + $0x18] sm:$0xff pattern:$0x75316420]
    %850 = vrot.lane.b32.xlu0 %v846, 92
    %v851 = vpop.permute.xlu0 %850
    %852 = vrot.lane.b32.xlu0 %v847, 92
    %v853 = vpop.permute.xlu0 %852
    %854 = vrot.lane.b32.xlu0 %v848, 92
    %v855 = vpop.permute.xlu0 %854
    %856 = vrot.lane.b32.xlu0 %v849, 92
    %v857 = vpop.permute.xlu0 %856
    %vm858 = vcmask 752640
    %v859 = vsel %vm858, %v851, %v853
    %v860 = vsel %vm858, %v853, %v855
    %v861 = vsel %vm858, %v855, %v857
    %s865 = scalar_lea.vmem [#allocation1], 1
    %866 = vst [vmem:[%s865] ss:$2 sm:$0xff] %v716
    %s867 = scalar_lea.vmem [#allocation1], 17
    %868 = vst [vmem:[%s867] ss:$2 sm:$0xff] %v718
    %v869 = vld.sshfl [vmem:[#allocation1] sm:$0xff pattern:$0x75316420]
    %v870 = vld.sshfl [vmem:[#allocation1 + $0x8] sm:$0xff pattern:$0x75316420]
    %v871 = vld.sshfl [vmem:[#allocation1 + $0x10] sm:$0xff pattern:$0x75316420]
    %v872 = vld.sshfl [vmem:[#allocation1 + $0x18] sm:$0xff pattern:$0x75316420]
    %873 = vrot.lane.b32.xlu0 %v869, 91
    %v874 = vpop.permute.xlu0 %873
    %875 = vrot.lane.b32.xlu0 %v870, 91
    %v876 = vpop.permute.xlu0 %875
    %877 = vrot.lane.b32.xlu0 %v871, 91
    %v878 = vpop.permute.xlu0 %877
    %879 = vrot.lane.b32.xlu0 %v872, 91
    %v880 = vpop.permute.xlu0 %879
    %vm881 = vcmask 744448
    %v882 = vsel %vm881, %v874, %v876
    %v883 = vsel %vm881, %v876, %v878
    %v884 = vsel %vm881, %v878, %v880
    %888 = vst [vmem:[#allocation1] ss:$2 sm:$0xff] %v716
    %s889 = scalar_lea.vmem [#allocation1], 16
    %890 = vst [vmem:[%s889] ss:$2 sm:$0xff] %v718
    %v891 = vld.sshfl [vmem:[#allocation1] sm:$0xff pattern:$0x75316420]
    %v892 = vld.sshfl [vmem:[#allocation1 + $0x8] sm:$0xff pattern:$0x75316420]
    %v893 = vld.sshfl [vmem:[#allocation1 + $0x10] sm:$0xff pattern:$0x75316420]
    %v894 = vld.sshfl [vmem:[#allocation1 + $0x18] sm:$0xff pattern:$0x75316420]
    %895 = vrot.lane.b32.xlu0 %v891, 90
    %v896 = vpop.permute.xlu0 %895
    %897 = vrot.lane.b32.xlu0 %v892, 90
    %v898 = vpop.permute.xlu0 %897
    %899 = vrot.lane.b32.xlu0 %v893, 90
    %v900 = vpop.permute.xlu0 %899
    %901 = vrot.lane.b32.xlu0 %v894, 90
    %v902 = vpop.permute.xlu0 %901
    %vm903 = vcmask 736256
    %v904 = vsel %vm903, %v896, %v898
    %v905 = vsel %vm903, %v898, %v900
    %v906 = vsel %vm903, %v900, %v902
    %v910 = vsel %vm33, %v724, %v747
    %v911 = vsel %vm33, %v725, %v748
    %v912 = vsel %vm33, %v726, %v749
    %v913 = vsel %vm33, %v769, %v792
    %v914 = vsel %vm33, %v770, %v793
    %v915 = vsel %vm33, %v771, %v794
    %v916 = vsel %vm33, %v814, %v837
    %v917 = vsel %vm33, %v815, %v838
    %v918 = vsel %vm33, %v816, %v839
    %v919 = vsel %vm33, %v859, %v882
    %v920 = vsel %vm33, %v860, %v883
    %v921 = vsel %vm33, %v861, %v884
    %v922 = vpack.c.bf16 %v911, %v910
    %v923 = vpack.c.bf16 %v912, %v912
    %v924 = vpack.c.bf16 %v914, %v913
    %v925 = vpack.c.bf16 %v915, %v915
    %v926 = vpack.c.bf16 %v917, %v916
    %v927 = vpack.c.bf16 %v918, %v918
    %v928 = vpack.c.bf16 %v920, %v919
    %v929 = vpack.c.bf16 %v921, %v921
    %v930 = vpack.c.bf16 %v905, %v904
    %v931 = vpack.c.bf16 %v906, %v906
    %v932 = vld [vmem:[%s415] sm:$0xff]
    %v933 = vld [vmem:[%s415 + $0x8] sm:$0xf]
    %v934 = vld [vmem:[%s415 + $0x8] sm:$0xff]
    %937 = vst [vmem:[#allocation1] ss:$2 sm:$0xff] %v932
    %s938 = scalar_lea.vmem [#allocation1], 16
    %939 = vst [vmem:[%s938] ss:$2 sm:$0xff] %v933
    %v940 = vld.sshfl [vmem:[#allocation1] sm:$0xff pattern:$0x75316420]
    %v941 = vld.sshfl [vmem:[#allocation1 + $0x8] sm:$0xff pattern:$0x75316420]
    %v942 = vld.sshfl [vmem:[#allocation1 + $0x10] sm:$0xff pattern:$0x75316420]
    %s947 = scalar_lea.vmem [#allocation1], 1
    %948 = vst [vmem:[%s947] ss:$2 sm:$0xff] %v932
    %s949 = scalar_lea.vmem [#allocation1], 17
    %950 = vst [vmem:[%s949] ss:$2 sm:$0xff] %v934
    %v951 = vld.sshfl [vmem:[#allocation1] sm:$0xff pattern:$0x75316420]
    %v952 = vld.sshfl [vmem:[#allocation1 + $0x8] sm:$0xff pattern:$0x75316420]
    %v953 = vld.sshfl [vmem:[#allocation1 + $0x10] sm:$0xff pattern:$0x75316420]
    %v954 = vld.sshfl [vmem:[#allocation1 + $0x18] sm:$0xff pattern:$0x75316420]
    %955 = vrot.lane.b32.xlu0 %v951, 127
    %v956 = vpop.permute.xlu0 %955
    %957 = vrot.lane.b32.xlu0 %v952, 127
    %v958 = vpop.permute.xlu0 %957
    %959 = vrot.lane.b32.xlu0 %v953, 127
    %v960 = vpop.permute.xlu0 %959
    %961 = vrot.lane.b32.xlu0 %v954, 127
    %v962 = vpop.permute.xlu0 %961
    %v963 = vsel %vm197, %v956, %v958
    %v964 = vsel %vm197, %v958, %v960
    %v965 = vsel %vm197, %v960, %v962
    %969 = vst [vmem:[#allocation1] ss:$2 sm:$0xff] %v932
    %s970 = scalar_lea.vmem [#allocation1], 16
    %971 = vst [vmem:[%s970] ss:$2 sm:$0xff] %v934
    %v972 = vld.sshfl [vmem:[#allocation1] sm:$0xff pattern:$0x75316420]
    %v973 = vld.sshfl [vmem:[#allocation1 + $0x8] sm:$0xff pattern:$0x75316420]
    %v974 = vld.sshfl [vmem:[#allocation1 + $0x10] sm:$0xff pattern:$0x75316420]
    %v975 = vld.sshfl [vmem:[#allocation1 + $0x18] sm:$0xff pattern:$0x75316420]
    %976 = vrot.lane.b32.xlu0 %v972, 126
    %v977 = vpop.permute.xlu0 %976
    %978 = vrot.lane.b32.xlu0 %v973, 126
    %v979 = vpop.permute.xlu0 %978
    %980 = vrot.lane.b32.xlu0 %v974, 126
    %v981 = vpop.permute.xlu0 %980
    %982 = vrot.lane.b32.xlu0 %v975, 126
    %v983 = vpop.permute.xlu0 %982
    %v984 = vsel %vm768, %v977, %v979
    %v985 = vsel %vm768, %v979, %v981
    %v986 = vsel %vm768, %v981, %v983
    %s990 = scalar_lea.vmem [#allocation1], 1
    %991 = vst [vmem:[%s990] ss:$2 sm:$0xff] %v932
    %s992 = scalar_lea.vmem [#allocation1], 17
    %993 = vst [vmem:[%s992] ss:$2 sm:$0xff] %v934
    %v994 = vld.sshfl [vmem:[#allocation1] sm:$0xff pattern:$0x75316420]
    %v995 = vld.sshfl [vmem:[#allocation1 + $0x8] sm:$0xff pattern:$0x75316420]
    %v996 = vld.sshfl [vmem:[#allocation1 + $0x10] sm:$0xff pattern:$0x75316420]
    %v997 = vld.sshfl [vmem:[#allocation1 + $0x18] sm:$0xff pattern:$0x75316420]
    %998 = vrot.lane.b32.xlu0 %v994, 110
    %v999 = vpop.permute.xlu0 %998
    %1000 = vrot.lane.b32.xlu0 %v995, 110
    %v1001 = vpop.permute.xlu0 %1000
    %1002 = vrot.lane.b32.xlu0 %v996, 110
    %v1003 = vpop.permute.xlu0 %1002
    %1004 = vrot.lane.b32.xlu0 %v997, 110
    %v1005 = vpop.permute.xlu0 %1004
    %v1006 = vsel %vm791, %v999, %v1001
    %v1007 = vsel %vm791, %v1001, %v1003
    %v1008 = vsel %vm791, %v1003, %v1005
    %1012 = vst [vmem:[#allocation1] ss:$2 sm:$0xff] %v932
    %s1013 = scalar_lea.vmem [#allocation1], 16
    %1014 = vst [vmem:[%s1013] ss:$2 sm:$0xff] %v934
    %v1015 = vld.sshfl [vmem:[#allocation1] sm:$0xff pattern:$0x75316420]
    %v1016 = vld.sshfl [vmem:[#allocation1 + $0x8] sm:$0xff pattern:$0x75316420]
    %v1017 = vld.sshfl [vmem:[#allocation1 + $0x10] sm:$0xff pattern:$0x75316420]
    %v1018 = vld.sshfl [vmem:[#allocation1 + $0x18] sm:$0xff pattern:$0x75316420]
    %1019 = vrot.lane.b32.xlu0 %v1015, 109
    %v1020 = vpop.permute.xlu0 %1019
    %1021 = vrot.lane.b32.xlu0 %v1016, 109
    %v1022 = vpop.permute.xlu0 %1021
    %1023 = vrot.lane.b32.xlu0 %v1017, 109
    %v1024 = vpop.permute.xlu0 %1023
    %1025 = vrot.lane.b32.xlu0 %v1018, 109
    %v1026 = vpop.permute.xlu0 %1025
    %v1027 = vsel %vm813, %v1020, %v1022
    %v1028 = vsel %vm813, %v1022, %v1024
    %v1029 = vsel %vm813, %v1024, %v1026
    %s1033 = scalar_lea.vmem [#allocation1], 1
    %1034 = vst [vmem:[%s1033] ss:$2 sm:$0xff] %v932
    %s1035 = scalar_lea.vmem [#allocation1], 17
    %1036 = vst [vmem:[%s1035] ss:$2 sm:$0xff] %v934
    %v1037 = vld.sshfl [vmem:[#allocation1] sm:$0xff pattern:$0x75316420]
    %v1038 = vld.sshfl [vmem:[#allocation1 + $0x8] sm:$0xff pattern:$0x75316420]
    %v1039 = vld.sshfl [vmem:[#allocation1 + $0x10] sm:$0xff pattern:$0x75316420]
    %v1040 = vld.sshfl [vmem:[#allocation1 + $0x18] sm:$0xff pattern:$0x75316420]
    %1041 = vrot.lane.b32.xlu0 %v1037, 108
    %v1042 = vpop.permute.xlu0 %1041
    %1043 = vrot.lane.b32.xlu0 %v1038, 108
    %v1044 = vpop.permute.xlu0 %1043
    %1045 = vrot.lane.b32.xlu0 %v1039, 108
    %v1046 = vpop.permute.xlu0 %1045
    %1047 = vrot.lane.b32.xlu0 %v1040, 108
    %v1048 = vpop.permute.xlu0 %1047
    %v1049 = vsel %vm836, %v1042, %v1044
    %v1050 = vsel %vm836, %v1044, %v1046
    %v1051 = vsel %vm836, %v1046, %v1048
    %1055 = vst [vmem:[#allocation1] ss:$2 sm:$0xff] %v932
    %s1056 = scalar_lea.vmem [#allocation1], 16
    %1057 = vst [vmem:[%s1056] ss:$2 sm:$0xff] %v934
    %v1058 = vld.sshfl [vmem:[#allocation1] sm:$0xff pattern:$0x75316420]
    %v1059 = vld.sshfl [vmem:[#allocation1 + $0x8] sm:$0xff pattern:$0x75316420]
    %v1060 = vld.sshfl [vmem:[#allocation1 + $0x10] sm:$0xff pattern:$0x75316420]
    %v1061 = vld.sshfl [vmem:[#allocation1 + $0x18] sm:$0xff pattern:$0x75316420]
    %1062 = vrot.lane.b32.xlu0 %v1058, 92
    %v1063 = vpop.permute.xlu0 %1062
    %1064 = vrot.lane.b32.xlu0 %v1059, 92
    %v1065 = vpop.permute.xlu0 %1064
    %1066 = vrot.lane.b32.xlu0 %v1060, 92
    %v1067 = vpop.permute.xlu0 %1066
    %1068 = vrot.lane.b32.xlu0 %v1061, 92
    %v1069 = vpop.permute.xlu0 %1068
    %v1070 = vsel %vm858, %v1063, %v1065
    %v1071 = vsel %vm858, %v1065, %v1067
    %v1072 = vsel %vm858, %v1067, %v1069
    %s1076 = scalar_lea.vmem [#allocation1], 1
    %1077 = vst [vmem:[%s1076] ss:$2 sm:$0xff] %v932
    %s1078 = scalar_lea.vmem [#allocation1], 17
    %1079 = vst [vmem:[%s1078] ss:$2 sm:$0xff] %v934
    %v1080 = vld.sshfl [vmem:[#allocation1] sm:$0xff pattern:$0x75316420]
    %v1081 = vld.sshfl [vmem:[#allocation1 + $0x8] sm:$0xff pattern:$0x75316420]
    %v1082 = vld.sshfl [vmem:[#allocation1 + $0x10] sm:$0xff pattern:$0x75316420]
    %v1083 = vld.sshfl [vmem:[#allocation1 + $0x18] sm:$0xff pattern:$0x75316420]
    %1084 = vrot.lane.b32.xlu0 %v1080, 91
    %v1085 = vpop.permute.xlu0 %1084
    %1086 = vrot.lane.b32.xlu0 %v1081, 91
    %v1087 = vpop.permute.xlu0 %1086
    %1088 = vrot.lane.b32.xlu0 %v1082, 91
    %v1089 = vpop.permute.xlu0 %1088
    %1090 = vrot.lane.b32.xlu0 %v1083, 91
    %v1091 = vpop.permute.xlu0 %1090
    %v1092 = vsel %vm881, %v1085, %v1087
    %v1093 = vsel %vm881, %v1087, %v1089
    %v1094 = vsel %vm881, %v1089, %v1091
    %1098 = vst [vmem:[#allocation1] ss:$2 sm:$0xff] %v932
    %s1099 = scalar_lea.vmem [#allocation1], 16
    %1100 = vst [vmem:[%s1099] ss:$2 sm:$0xff] %v934
    %v1101 = vld.sshfl [vmem:[#allocation1] sm:$0xff pattern:$0x75316420]
    %v1102 = vld.sshfl [vmem:[#allocation1 + $0x8] sm:$0xff pattern:$0x75316420]
    %v1103 = vld.sshfl [vmem:[#allocation1 + $0x10] sm:$0xff pattern:$0x75316420]
    %v1104 = vld.sshfl [vmem:[#allocation1 + $0x18] sm:$0xff pattern:$0x75316420]
    %1105 = vrot.lane.b32.xlu0 %v1101, 90
    %v1106 = vpop.permute.xlu0 %1105
    %1107 = vrot.lane.b32.xlu0 %v1102, 90
    %v1108 = vpop.permute.xlu0 %1107
    %1109 = vrot.lane.b32.xlu0 %v1103, 90
    %v1110 = vpop.permute.xlu0 %1109
    %1111 = vrot.lane.b32.xlu0 %v1104, 90
    %v1112 = vpop.permute.xlu0 %1111
    %v1113 = vsel %vm903, %v1106, %v1108
    %v1114 = vsel %vm903, %v1108, %v1110
    %v1115 = vsel %vm903, %v1110, %v1112
    %v1119 = vsel %vm33, %v940, %v963
    %v1120 = vsel %vm33, %v941, %v964
    %v1121 = vsel %vm33, %v942, %v965
    %v1122 = vsel %vm33, %v984, %v1006
    %v1123 = vsel %vm33, %v985, %v1007
    %v1124 = vsel %vm33, %v986, %v1008
    %v1125 = vsel %vm33, %v1027, %v1049
    %v1126 = vsel %vm33, %v1028, %v1050
    %v1127 = vsel %vm33, %v1029, %v1051
    %v1128 = vsel %vm33, %v1070, %v1092
    %v1129 = vsel %vm33, %v1071, %v1093
    %v1130 = vsel %vm33, %v1072, %v1094
    %v1131 = vpack.c.bf16 %v1120, %v1119
    %v1132 = vpack.c.bf16 %v1121, %v1121
    %v1133 = vpack.c.bf16 %v1123, %v1122
    %v1134 = vpack.c.bf16 %v1124, %v1124
    %v1135 = vpack.c.bf16 %v1126, %v1125
    %v1136 = vpack.c.bf16 %v1127, %v1127
    %v1137 = vpack.c.bf16 %v1129, %v1128
    %v1138 = vpack.c.bf16 %v1130, %v1130
    %v1139 = vpack.c.bf16 %v1114, %v1113
    %v1140 = vpack.c.bf16 %v1115, %v1115
    %v1151 = vunpack.c.l.b16 %v922
    %v1152 = vunpack.c.h.b16 %v922
    %v1153 = vunpack.c.l.b16 %v923
    %v1154 = vunpack.c.l.b16 %v924
    %v1155 = vunpack.c.h.b16 %v924
    %v1156 = vunpack.c.l.b16 %v925
    %v1157 = vunpack.c.l.b16 %v926
    %v1158 = vunpack.c.h.b16 %v926
    %v1159 = vunpack.c.l.b16 %v927
    %v1160 = vunpack.c.l.b16 %v928
    %v1161 = vunpack.c.h.b16 %v928
    %v1162 = vunpack.c.l.b16 %v929
    %v1163 = vunpack.c.l.b16 %v930
    %v1164 = vunpack.c.h.b16 %v930
    %v1165 = vunpack.c.l.b16 %v931
    %v1166 = vpack.c.b16 %v1154, %v1151
    %v1167 = vpack.c.b16 %v1155, %v1152
    %v1168 = vpack.c.b16 %v1156, %v1153
    %v1169 = vpack.c.b16 %v1160, %v1157
    %v1170 = vpack.c.b16 %v1161, %v1158
    %v1171 = vpack.c.b16 %v1162, %v1159
    %v1172 = vpack.c.b16 %v1163, %v1163
    %v1173 = vpack.c.b16 %v1164, %v1164
    %v1174 = vpack.c.b16 %v1165, %v1165
    %v1191 = vunpack.c.l.b16 %v1131
    %v1192 = vunpack.c.h.b16 %v1131
    %v1193 = vunpack.c.l.b16 %v1132
    %v1194 = vunpack.c.l.b16 %v1133
    %v1195 = vunpack.c.h.b16 %v1133
    %v1196 = vunpack.c.l.b16 %v1134
    %v1197 = vunpack.c.l.b16 %v1135
    %v1198 = vunpack.c.h.b16 %v1135
    %v1199 = vunpack.c.l.b16 %v1136
    %v1200 = vunpack.c.l.b16 %v1137
    %v1201 = vunpack.c.h.b16 %v1137
    %v1202 = vunpack.c.l.b16 %v1138
    %v1203 = vunpack.c.l.b16 %v1139
    %v1204 = vunpack.c.h.b16 %v1139
    %v1205 = vunpack.c.l.b16 %v1140
    %v1206 = vpack.c.b16 %v1194, %v1191
    %v1207 = vpack.c.b16 %v1195, %v1192
    %v1208 = vpack.c.b16 %v1196, %v1193
    %v1209 = vpack.c.b16 %v1200, %v1197
    %v1210 = vpack.c.b16 %v1201, %v1198
    %v1211 = vpack.c.b16 %v1202, %v1199
    %v1212 = vpack.c.b16 %v1203, %v1203
    %v1213 = vpack.c.b16 %v1204, %v1204
    %v1214 = vpack.c.b16 %v1205, %v1205
    %v1221 = vld [vmem:[%s1] sm:$0xf]
    %v1222 = vld [vmem:[%s2] sm:$0xff]
    %1224 = vset.pattern.permute.xlu0 0
    %1225 = vperm.xlu0 %1224, %v1222
    %v1226 = vpop.permute.xlu0 %1225
    %vm1228 = vcmask 293888
    %v1230 = vsel %vm1228, %v1221, 0
    %vm1232 = vcmask 1041408
    %v1234 = vsel %vm1232, %v1172, 0
    %v1237 = vsel %vm1232, %v1173, 0
    %v1240 = vsel %vm1232, %v1174, 0
    %v1243 = vsel %vm1232, %v1212, 0
    %v1246 = vsel %vm1232, %v1213, 0
    %v1249 = vsel %vm1232, %v1214, 0
    %1251 = vmatpush.bf16.msra.mxu0 0
    %1252 = vmatpush.bf16.msra.mxu0 0
    %1253 = vmatpush.bf16.msra.mxu0 0
    %1254 = vmatpush.bf16.msra.mxu0 0
    %1255 = vmatpush.bf16.msra.mxu0 0
    %1256 = vmatpush.bf16.msra.mxu0 %v1234
    %1257 = vmatpush.bf16.msra.mxu0 %v1169
    %1258 = vmatpush.bf16.msra.mxu0 %v1166
    %1259 = vmatmul.bf16.gmra.mxu0 %v1230
    %v1260 = vpop.f32.mrf.mxu0
    %v1261 = vadd.f32 %v1226, %v1260
    %v1262 = vpop.f32.mrf.mxu0
    %1263 = vdwg.mxu0
    %1264 = vmatpush.bf16.msra.mxu0 0
    %1265 = vmatpush.bf16.msra.mxu0 0
    %1266 = vmatpush.bf16.msra.mxu0 0
    %1267 = vmatpush.bf16.msra.mxu0 0
    %1268 = vmatpush.bf16.msra.mxu0 0
    %1269 = vmatpush.bf16.msra.mxu0 %v1237
    %1270 = vmatpush.bf16.msra.mxu0 %v1170
    %1271 = vmatpush.bf16.msra.mxu0 %v1167
    %1272 = vmatmul.bf16.gmra.mxu0 %v1230
    %v1273 = vpop.f32.mrf.mxu0
    %v1274 = vadd.f32 %v1226, %v1273
    %v1275 = vpop.f32.mrf.mxu0
    %1276 = vdwg.mxu0
    %1277 = vmatpush.bf16.msra.mxu0 0
    %1278 = vmatpush.bf16.msra.mxu0 0
    %1279 = vmatpush.bf16.msra.mxu0 0
    %1280 = vmatpush.bf16.msra.mxu0 0
    %1281 = vmatpush.bf16.msra.mxu0 0
    %1282 = vmatpush.bf16.msra.mxu0 %v1240
    %1283 = vmatpush.bf16.msra.mxu0 %v1171
    %1284 = vmatpush.bf16.msra.mxu0 %v1168
    %1285 = vmatmul.bf16.gmra.mxu0 %v1230
    %v1286 = vpop.f32.mrf.mxu0
    %v1287 = vadd.f32 %v1226, %v1286
    %v1288 = vpop.f32.mrf.mxu0
    %1289 = vdwg.mxu0
    %1290 = vmatpush.bf16.msra.mxu0 0
    %1291 = vmatpush.bf16.msra.mxu0 0
    %1292 = vmatpush.bf16.msra.mxu0 0
    %1293 = vmatpush.bf16.msra.mxu0 0
    %1294 = vmatpush.bf16.msra.mxu0 0
    %1295 = vmatpush.bf16.msra.mxu0 %v1243
    %1296 = vmatpush.bf16.msra.mxu0 %v1209
    %1297 = vmatpush.bf16.msra.mxu0 %v1206
    %1298 = vmatmul.bf16.gmra.mxu0 %v1230
    %v1299 = vpop.f32.mrf.mxu0
    %v1300 = vadd.f32 %v1226, %v1299
    %v1301 = vpop.f32.mrf.mxu0
    %1302 = vdwg.mxu0
    %1303 = vmatpush.bf16.msra.mxu0 0
    %1304 = vmatpush.bf16.msra.mxu0 0
    %1305 = vmatpush.bf16.msra.mxu0 0
    %1306 = vmatpush.bf16.msra.mxu0 0
    %1307 = vmatpush.bf16.msra.mxu0 0
    %1308 = vmatpush.bf16.msra.mxu0 %v1246
    %1309 = vmatpush.bf16.msra.mxu0 %v1210
    %1310 = vmatpush.bf16.msra.mxu0 %v1207
    %1311 = vmatmul.bf16.gmra.mxu0 %v1230
    %v1312 = vpop.f32.mrf.mxu0
    %v1313 = vadd.f32 %v1226, %v1312
    %v1314 = vpop.f32.mrf.mxu0
    %1315 = vdwg.mxu0
    %1316 = vmatpush.bf16.msra.mxu0 0
    %1317 = vmatpush.bf16.msra.mxu0 0
    %1318 = vmatpush.bf16.msra.mxu0 0
    %1319 = vmatpush.bf16.msra.mxu0 0
    %1320 = vmatpush.bf16.msra.mxu0 0
    %1321 = vmatpush.bf16.msra.mxu0 %v1249
    %1322 = vmatpush.bf16.msra.mxu0 %v1211
    %1323 = vmatpush.bf16.msra.mxu0 %v1208
    %1324 = vmatmul.bf16.gmra.mxu0 %v1230
    %v1325 = vpop.f32.mrf.mxu0
    %v1326 = vadd.f32 %v1226, %v1325
    %v1327 = vpop.f32.mrf.mxu0
    %1328 = vdwg.mxu0
    %1329 = vst [vmem:[#allocation6] sm:$0xff] %v1261
    %1330 = vst [vmem:[#allocation6 + $0x8] sm:$0xff] %v1274
    %1331 = vst [vmem:[#allocation6 + $0x10] sm:$0xff] %v1287
    %s1332 = scalar_lea.vmem [#allocation6], 24
    %1333 = vst [vmem:[%s1332] sm:$0xff] %v1300
    %1334 = vst [vmem:[%s1332 + $0x8] sm:$0xff] %v1313
    %1335 = vst [vmem:[%s1332 + $0x10] sm:$0xff] %v1326
    // Predicated region
    $region18: #{tpu_custom_call.1} parent=1 // pred_check
      _
    $region19: #{tpu_custom_call.1} parent=1 // pred_check_branch
      %1337 = sbr.rel (0) target = $region21
    $region20: #{tpu_custom_call.1} parent=1 // pred_region
      %1339 = vsyncadd [#allocation5], 0
      %s1340 = sshll.u32 [#allocation6], 4
      %s1341 = int_to_ptr.vmem [resolvable:$true] %s1340
      %s1342 = sshll.u32 %s3, 4
      %s1343 = int_to_ptr.hbm [resolvable:$true] %s1342
      %1348 = dma.vmem_to_hbm [thread:$0]  %s1341, 768, %s1343, [#allocation5], 384, 384, 24
    $region21: #{tpu_custom_call.1} parent=1 // pred_fallthru
      _
    // Predicated region
    $region22: #{tpu_custom_call.1} parent=1 // pred_check
      _
    $region23: #{tpu_custom_call.1} parent=1 // pred_check_branch
      %1350 = sbr.rel (0) target = $region25
    $region24: #{tpu_custom_call.1} parent=1 // pred_region
      %1352 = dma.done [#allocation5], 768
    $region25: #{tpu_custom_call.1} parent=1 // pred_fallthru
      _
    %1353 = vsyncpa [#allocation4], 1
    %1354 = vsyncpa [#allocation5], 1

</llo_original>
